<compile_context>
chip_gen: v7x
topology: tpu7x:2x2x1
jax: 0.10.0
libtpu: 0.0.40
codegen_flags: <defaults>
</compile_context>

<pallas_src>
import jax
import jax.numpy as jnp
from jax.experimental import pallas as pl
from jax.experimental.pallas import tpu as pltpu


def _lrelu_kernel(x_ref, o_ref):
    x = x_ref[...]
    # 0.2 is a weak Python float -> no dtype promotion (bf16 stays bf16).
    o_ref[...] = jnp.maximum(x * 0.2, x)


def _sublane_multiple(dtype) -> int:
    # Sub-32-bit dtypes pack rows along sublanes: one vreg holds [8,128] f32,
    # [16,128] bf16, [32,128] int8.  Align block rows to the native tile.
    return max(8, 32 // jnp.dtype(dtype).itemsize)


def _pallas_lrelu_2d(x2d: jax.Array) -> jax.Array:
    """Run the elementwise kernel over a (rows, width) lane-dense slab."""
    rows, width = x2d.shape
    itemsize = x2d.dtype.itemsize
    sub = _sublane_multiple(x2d.dtype)

    # ~8 MiB blocks: per-grid-step fixed overhead (~0.35 us) is negligible even
    # at v7x's ~3.2 TB/s, while in+out double buffering (~32 MiB) stays under
    # the 48 MiB scoped limit and v7x's 64 MiB physical VMEM.
    target_block_bytes = 8 * 1024 * 1024
    block_rows = target_block_bytes // (width * itemsize)
    block_rows = max(sub, (block_rows // sub) * sub)
    block_rows = min(block_rows, rows)

    # With only 1-3 grid steps the software pipeline has nothing to overlap and
    # on v7x one TensorCore may idle: split into >=4 sublane-aligned steps when
    # the slab is tall enough.
    min_steps = 4
    if pl.cdiv(rows, block_rows) < min_steps and rows >= min_steps * sub:
        block_rows = max(sub, ((rows // min_steps) // sub) * sub)

    grid = (pl.cdiv(rows, block_rows),)  # ragged last row-block handled by Pallas

    n_elems = rows * width
    cost = pl.CostEstimate(
        flops=2 * n_elems,                      # mul + max per element
        transcendentals=0,
        bytes_accessed=2 * n_elems * itemsize,  # read + write: memory-bound
    )

    return pl.pallas_call(
        _lrelu_kernel,
        out_shape=jax.ShapeDtypeStruct((rows, width), x2d.dtype),
        grid=grid,
        in_specs=[pl.BlockSpec((block_rows, width), lambda i: (i, 0))],
        out_specs=pl.BlockSpec((block_rows, width), lambda i: (i, 0)),
        compiler_params=pltpu.CompilerParams(
            # No-op on single-TC v5e/v6e; lets the runtime shard the 1-D grid
            # across both v7x TensorCores.
            dimension_semantics=("parallel",),
            # v5e default scoped VMEM is only 16 MiB; raise so 8 MiB blocks
            # keep full double buffering (still leaves headroom on v7x).
            vmem_limit_bytes=48 * 1024 * 1024,
        ),
        cost_estimate=cost,
    )(x2d)


_WIDTH_CANDIDATES = (32768, 16384, 8192, 4096, 2048, 1024, 512, 256, 128)


def lrelu(x: jax.Array, *, min_pallas_elems: int = 256 * 1024) -> jax.Array:
    """Elementwise max(0.2*x, x), exact match of the PyTorch module forward."""
    n = x.size
    # Small inputs and non-float dtypes (promotion semantics) use the fused
    # XLA path: strictly cheaper than kernel dispatch + pipeline prologue.
    if n < min_pallas_elems or not jnp.issubdtype(x.dtype, jnp.floating):
        return jnp.maximum(x * 0.2, x)

    orig_shape = x.shape
    x_flat = jnp.ravel(x)  # contiguous reshape: free

    # Ragged counts: kernel over the 128-divisible prefix only; the <=127
    # element tail is computed in plain JAX.  No padded full-array copy and no
    # full-array slice afterwards.
    tail = n % 128
    main_n = n - tail
    if main_n == 0:
        return jnp.maximum(x * 0.2, x)

    # Widest lane-dense slab dividing the prefix: long unmasked contiguous
    # stores and large DMA descriptors.  128 always divides main_n.
    width = 128
    for w in _WIDTH_CANDIDATES:
        if main_n % w == 0:
            width = w
            break

    main = x_flat if tail == 0 else x_flat[:main_n]
    out_main = _pallas_lrelu_2d(main.reshape(main_n // width, width)).reshape(-1)

    if tail:
        t = x_flat[main_n:]
        out_flat = jnp.concatenate([out_main, jnp.maximum(t * 0.2, t)])
    else:
        out_flat = out_main
    return out_flat.reshape(orig_shape)


if __name__ == "__main__":
    key = jax.random.PRNGKey(0)
    k1, k2, k3, k4 = jax.random.split(key, 4)

    # 1) Module-spec small NCHW input (batch=2, channels=4, 16x16): fused-XLA
    #    small-input fast path.
    x_small = jax.random.normal(k1, (2, 4, 16, 16), dtype=jnp.float32)

    # 2) Larger f32 input that takes the Pallas path naturally: 32768-wide
    #    slab, 4-step "parallel" grid (pipeline overlap / v7x core sharding).
    x_big = jax.random.normal(k2, (4, 8, 256, 256), dtype=jnp.float32)

    # 3) Ragged element count (816 = 6*128 + 48), forced through the Pallas
    #    path: exercises the divisible-prefix kernel + pure-JAX tail.
    x_rag = jax.random.normal(k3, (1, 3, 16, 17), dtype=jnp.float32)

    # 4) bf16 input forced through the Pallas path: exercises the 16-row
    #    sublane-packing alignment.
    x_bf16 = jax.random.normal(k4, (2, 4, 64, 128), dtype=jnp.float32).astype(
        jnp.bfloat16
    )

    cases = [
        (x_small, {}),
        (x_big, {}),
        (x_rag, {"min_pallas_elems": 0}),
        (x_bf16, {"min_pallas_elems": 0}),
    ]
    for x, kwargs in cases:
        y = lrelu(x, **kwargs)
        jax.block_until_ready(y)
        y_ref = jnp.maximum(x * 0.2, x)
        assert y.shape == x.shape and y.dtype == x.dtype
        assert bool(jnp.array_equal(y, y_ref))

    print("KERNEL_OK")
</pallas_src>

<mosaic_0001>
module attributes {stable_mosaic.version = 11 : i64} {
  func.func @_lrelu_kernel(%arg0: i32, %arg1: memref<16x32768xf32, #tpu.memory_space<vmem>>, %arg2: memref<16x32768xf32, #tpu.memory_space<vmem>>) attributes {dimension_semantics = [#tpu.dimension_semantics<parallel>], iteration_bounds = array<i64: 4>, scalar_prefetch = 0 : i64, scratch_operands = 0 : i64, tpu.core_type = #tpu.core_type<tc>, window_params = [{transform_indices = @transform_0, window_bounds = array<i64: 16, 32768>}, {transform_indices = @transform_1, window_bounds = array<i64: 16, 32768>}]} {
    %c0 = arith.constant 0 : index
    %c0_0 = arith.constant 0 : index
    %0 = vector.load %arg1[%c0, %c0_0] : memref<16x32768xf32, #tpu.memory_space<vmem>>, vector<16x32768xf32>
    %cst = arith.constant 2.000000e-01 : f32
    %1 = vector.broadcast %cst : f32 to vector<16x32768xf32>
    %2 = arith.mulf %0, %1 : vector<16x32768xf32>
    %3 = arith.maximumf %2, %0 : vector<16x32768xf32>
    %c0_1 = arith.constant 0 : index
    %c0_2 = arith.constant 0 : index
    %4 = vector.load %arg2[%c0_1, %c0_2] : memref<16x32768xf32, #tpu.memory_space<vmem>>, vector<16x32768xf32>
    tpu.vector_store %arg2[%c0_1, %c0_2], %3 {strides = array<i32>} : memref<16x32768xf32, #tpu.memory_space<vmem>>, vector<16x32768xf32>,
    return
  }
  func.func @transform_0(%arg0: i32) -> (i32, i32) {
    %c0_i32 = arith.constant 0 : i32
    %c0_i32_0 = arith.constant 0 : i32
    return %arg0, %c0_i32 : i32, i32
  }
  func.func @transform_1(%arg0: i32) -> (i32, i32) {
    %c0_i32 = arith.constant 0 : i32
    %c0_i32_0 = arith.constant 0 : i32
    return %arg0, %c0_i32 : i32, i32
  }
}

</mosaic_0001>

<llo_original>
// kernel: tpu_custom_call.1
$region0: #{tpu_custom_call.1}
  #allocation0 [shape = 'u32[]', space=smem, size = 0x4, offset = 0x4, fixed_abs, tag = 'smem constant byte address 0x4 - core index']
  #allocation1 [shape = 'u32[144,128]{1,0:T(1,128)}', space=vmem, size = 0x12000, scoped, tag = 'internal scratch']
  %s0 = inlined_call_operand.hbm [shape: f32[64,32768], index: 0, kind: input, shape index: {}]
  %s1 = inlined_call_operand.hbm [shape: f32[64,32768], index: 1, kind: output, shape index: {}]
  %s2 = sld [smem:[#allocation0]]
  $region41: #{tpu_custom_call.1} parent=0
    _
  %s4 = ssub.s32 1, %s2
  %s5 = scalar_select 0, %s4, %s2
  $region1: #{tpu_custom_call.1} parent=0
    #allocation2 [shape = 'u8[4194304]{0}', space=vmem, size = 0x400000, scoped, tag = 'input window, operand 0']
    #allocation3 [shape = 's32[2]{0}', space=sflag, size = 0x8, scoped, tag = 'scoped memory for tpu_custom_call.1']
    #allocation4 [shape = 's32[2]{0}', space=sflag, size = 0x8, scoped, tag = 'scoped memory for tpu_custom_call.1']
    #allocation5 [shape = 'u8[4194304]{0}', space=vmem, size = 0x400000, scoped, tag = 'output window, operand 0']
    %6 = vsyncpa [#allocation3], 0
    %s7 = scalar_lea.sflag [#allocation3], 1
    %8 = vsyncpa %s7, 0
    %9 = vsyncpa [#allocation4], 0
    %s10 = scalar_lea.sflag [#allocation4], 1
    %11 = vsyncpa %s10, 0
    loop: start=0, step=1, limit=6
    $region2: #{tpu_custom_call.1} parent=1 // loop_pre_header
      _
    $region3: #{tpu_custom_call.1} parent=1 // loop_header
      %s13 = sphi 0, %s17
      %p14 = scmp.ge.s32.totalorder %s13, 6
      %s23 = sphi 0, %s25
      %s26 = sphi 0, %s23
      %s27 = sphi 0, %s26
      %s43 = sphi 0, %s27
      %s49 = sphi 0, %s51
      %s52 = sphi 0, %s49
      %s53 = sphi 0, %s52
      %s69 = sphi 0, %s53
    $region4: #{tpu_custom_call.1} parent=1 // loop_header_branch
      %16 = sbr.rel (%p14) target = $region8
    $region5: #{tpu_custom_call.1} parent=1 // loop_body
      %s18 = ssub.s32 %s13, 1
      %s19 = ssub.s32 %s13, 2
      %s20 = sadd.s32 %s13, 1
      %s21 = ssub.s32 %s13, %s20
      %p22 = scmp.eq.s32.totalorder %s21, 0
      %s24 = sadd.s32 %s23, 1
      %s25 = scalar_select %p22, %s23, %s24
      %p28 = pneg %p22
      %p29 = scmp.eq.s32.totalorder %s13, 3
      %p30 = por %p28, %p29
      %p31 = scmp.ne.s32.totalorder %s23, %s26
      %p32 = scmp.eq.s32.totalorder %s13, 0
      %p33 = por %p31, %p32
      %p34 = scmp.ne.s32.totalorder %s23, %s26
      %p35 = scmp.eq.s32.totalorder %s18, 3
      %p36 = por %p34, %p35
      %p37 = scmp.ne.s32.totalorder %s26, %s27
      %p38 = scmp.eq.s32.totalorder %s18, 0
      %p39 = por %p37, %p38
      %p40 = scmp.ne.s32.totalorder %s26, %s27
      %p41 = scmp.eq.s32.totalorder %s19, 3
      %p42 = por %p40, %p41
      %p44 = scmp.ne.s32.totalorder %s27, %s43
      %p45 = scmp.eq.s32.totalorder %s19, 0
      %p46 = por %p44, %p45
      %s47 = ssub.s32 %s13, %s20
      %p48 = scmp.eq.s32.totalorder %s47, 0
      %s50 = sadd.s32 %s49, 1
      %s51 = scalar_select %p48, %s49, %s50
      %p54 = pneg %p48
      %p55 = scmp.eq.s32.totalorder %s13, 3
      %p56 = por %p54, %p55
      %p57 = scmp.ne.s32.totalorder %s49, %s52
      %p58 = scmp.eq.s32.totalorder %s13, 0
      %p59 = por %p57, %p58
      %p60 = scmp.ne.s32.totalorder %s49, %s52
      %p61 = scmp.eq.s32.totalorder %s18, 3
      %p62 = por %p60, %p61
      %p63 = scmp.ne.s32.totalorder %s52, %s53
      %p64 = scmp.eq.s32.totalorder %s18, 0
      %p65 = por %p63, %p64
      %p66 = scmp.ne.s32.totalorder %s52, %s53
      %p67 = scmp.eq.s32.totalorder %s19, 3
      %p68 = por %p66, %p67
      %p70 = scmp.ne.s32.totalorder %s53, %s69
      %p71 = scmp.eq.s32.totalorder %s19, 0
      %p72 = por %p70, %p71
      %p73 = scmp.le.s32.totalorder 1, %s13
      %p74 = scmp.lt.s32.totalorder %s13, 5
      %p75 = pnand %p73, %p74
      %p76 = pneg %p75
      // Predicated region
      $region9: #{tpu_custom_call.1} parent=5 // pred_check
        _
      $region10: #{tpu_custom_call.1} parent=5 // pred_check_branch
        %78 = sbr.rel (%p75) target = $region12
      $region11: #{tpu_custom_call.1} parent=5 // pred_region
        %s79 = ssub.s32 %s13, 1
      $region12: #{tpu_custom_call.1} parent=5 // pred_fallthru
        _
      %p80 = scmp.lt.s32.totalorder %s13, 4
      // Predicated region
      $region13: #{tpu_custom_call.1} parent=5 // pred_check
        %p81 = pneg %p80
      $region14: #{tpu_custom_call.1} parent=5 // pred_check_branch
        %83 = sbr.rel (%p81) target = $region16
      $region15: #{tpu_custom_call.1} parent=5 // pred_region
        // Predicated region
        $region17: #{tpu_custom_call.1} parent=15 // pred_check
          %p84 = pneg %p33
        $region18: #{tpu_custom_call.1} parent=15 // pred_check_branch
          %86 = sbr.rel (%p84) target = $region20
        $region19: #{tpu_custom_call.1} parent=15 // pred_region
          %s87 = sand.u32 %s23, 1
          %s88 = scalar_lea.sflag [#allocation3], %s87
          %s89 = sand.u32 %s23, 1
          %s90 = smul.addr %s89, 4096
          %s91 = scalar_lea.vmem [#allocation2], %s90
          %s92 = smul.u32 2, %s13
          %s94 = ssub.s32 65536, 65536
          %95 = vsyncadd %s88, %s94
          %s96 = smul.addr %s92, 256
          %s97 = smul.addr %s96, 128
          %s98 = scalar_lea.hbm %s0, %s97
          %s99 = sshll.u32 %s91, 4
          %s100 = int_to_ptr.vmem [resolvable:$true] %s99
          %105 = dma.hbm_to_vmem [thread:$0]  %s98, 65536, %s100, %s88, 32768, 32768, 2048
        $region20: #{tpu_custom_call.1} parent=15 // pred_fallthru
          _
      $region16: #{tpu_custom_call.1} parent=5 // pred_fallthru
        _
      %p106 = scmp.le.s32.totalorder 1, %s13
      %p107 = scmp.lt.s32.totalorder %s13, 5
      %p108 = pnand %p106, %p107
      %p109 = pneg %p108
      // Predicated region
      $region21: #{tpu_custom_call.1} parent=5 // pred_check
        _
      $region22: #{tpu_custom_call.1} parent=5 // pred_check_branch
        %111 = sbr.rel (%p108) target = $region24
      $region23: #{tpu_custom_call.1} parent=5 // pred_region
        %s112 = ssub.s32 %s13, 1
        %s113 = sand.u32 %s26, 1
        %s114 = scalar_lea.sflag [#allocation3], %s113
        %s115 = sand.u32 %s26, 1
        %s116 = smul.addr %s115, 4096
        %s117 = scalar_lea.vmem [#allocation2], %s116
        // Predicated region
        $region25: #{tpu_custom_call.1} parent=23 // pred_check
          %p118 = pneg %p39
        $region26: #{tpu_custom_call.1} parent=23 // pred_check_branch
          %120 = sbr.rel (%p118) target = $region28
        $region27: #{tpu_custom_call.1} parent=23 // pred_region
          %121 = dma.done %s114, 65536
        $region28: #{tpu_custom_call.1} parent=23 // pred_fallthru
          _
        %s122 = sand.u32 %s26, 1
        %s123 = scalar_lea.sflag [#allocation3], %s122
        %s124 = sand.u32 %s26, 1
        %s125 = smul.addr %s124, 4096
        %s126 = scalar_lea.vmem [#allocation2], %s125
        %p127 = pneg %p39
        %p128 = pneg %p36
        %p129 = pneg %p65
        %p130 = pneg %p62
        %s131 = sand.u32 %s52, 1
        %s132 = scalar_lea.sflag [#allocation4], %s131
        %s133 = sand.u32 %s52, 1
        %s134 = smul.addr %s133, 4096
        %s135 = scalar_lea.vmem [#allocation5], %s134
        %s136 = smul.u32 2, %s18
        %s137 = smul.u32 2, %s18
        %v138 = vld [vmem:[%s117] sm:$0xff]
        %v139 = vld [vmem:[%s117 + $0x8] sm:$0xff]
        %v140 = vld [vmem:[%s117 + $0x10] sm:$0xff]
        %v141 = vld [vmem:[%s117 + $0x18] sm:$0xff]
        %v142 = vld [vmem:[%s117 + $0x20] sm:$0xff]
        %v143 = vld [vmem:[%s117 + $0x28] sm:$0xff]
        %v144 = vld [vmem:[%s117 + $0x30] sm:$0xff]
        %v145 = vld [vmem:[%s117 + $0x38] sm:$0xff]
        %v146 = vld [vmem:[%s117 + $0x40] sm:$0xff]
        %v147 = vld [vmem:[%s117 + $0x48] sm:$0xff]
        %v148 = vld [vmem:[%s117 + $0x50] sm:$0xff]
        %v149 = vld [vmem:[%s117 + $0x58] sm:$0xff]
        %v150 = vld [vmem:[%s117 + $0x60] sm:$0xff]
        %v151 = vld [vmem:[%s117 + $0x68] sm:$0xff]
        %v152 = vld [vmem:[%s117 + $0x70] sm:$0xff]
        %v153 = vld [vmem:[%s117 + $0x78] sm:$0xff]
        %v154 = vld [vmem:[%s117 + $0x80] sm:$0xff]
        %v155 = vld [vmem:[%s117 + $0x88] sm:$0xff]
        %v156 = vld [vmem:[%s117 + $0x90] sm:$0xff]
        %v157 = vld [vmem:[%s117 + $0x98] sm:$0xff]
        %v158 = vld [vmem:[%s117 + $0xa0] sm:$0xff]
        %v159 = vld [vmem:[%s117 + $0xa8] sm:$0xff]
        %v160 = vld [vmem:[%s117 + $0xb0] sm:$0xff]
        %v161 = vld [vmem:[%s117 + $0xb8] sm:$0xff]
        %v162 = vld [vmem:[%s117 + $0xc0] sm:$0xff]
        %v163 = vld [vmem:[%s117 + $0xc8] sm:$0xff]
        %v164 = vld [vmem:[%s117 + $0xd0] sm:$0xff]
        %v165 = vld [vmem:[%s117 + $0xd8] sm:$0xff]
        %v166 = vld [vmem:[%s117 + $0xe0] sm:$0xff]
        %v167 = vld [vmem:[%s117 + $0xe8] sm:$0xff]
        %v168 = vld [vmem:[%s117 + $0xf0] sm:$0xff]
        %v169 = vld [vmem:[%s117 + $0xf8] sm:$0xff]
        %v170 = vld [vmem:[%s117 + $0x100] sm:$0xff]
        %v171 = vld [vmem:[%s117 + $0x108] sm:$0xff]
        %v172 = vld [vmem:[%s117 + $0x110] sm:$0xff]
        %v173 = vld [vmem:[%s117 + $0x118] sm:$0xff]
        %v174 = vld [vmem:[%s117 + $0x120] sm:$0xff]
        %v175 = vld [vmem:[%s117 + $0x128] sm:$0xff]
        %v176 = vld [vmem:[%s117 + $0x130] sm:$0xff]
        %v177 = vld [vmem:[%s117 + $0x138] sm:$0xff]
        %v178 = vld [vmem:[%s117 + $0x140] sm:$0xff]
        %v179 = vld [vmem:[%s117 + $0x148] sm:$0xff]
        %v180 = vld [vmem:[%s117 + $0x150] sm:$0xff]
        %v181 = vld [vmem:[%s117 + $0x158] sm:$0xff]
        %v182 = vld [vmem:[%s117 + $0x160] sm:$0xff]
        %v183 = vld [vmem:[%s117 + $0x168] sm:$0xff]
        %v184 = vld [vmem:[%s117 + $0x170] sm:$0xff]
        %v185 = vld [vmem:[%s117 + $0x178] sm:$0xff]
        %v186 = vld [vmem:[%s117 + $0x180] sm:$0xff]
        %v187 = vld [vmem:[%s117 + $0x188] sm:$0xff]
        %v188 = vld [vmem:[%s117 + $0x190] sm:$0xff]
        %v189 = vld [vmem:[%s117 + $0x198] sm:$0xff]
        %v190 = vld [vmem:[%s117 + $0x1a0] sm:$0xff]
        %v191 = vld [vmem:[%s117 + $0x1a8] sm:$0xff]
        %v192 = vld [vmem:[%s117 + $0x1b0] sm:$0xff]
        %v193 = vld [vmem:[%s117 + $0x1b8] sm:$0xff]
        %v194 = vld [vmem:[%s117 + $0x1c0] sm:$0xff]
        %v195 = vld [vmem:[%s117 + $0x1c8] sm:$0xff]
        %v196 = vld [vmem:[%s117 + $0x1d0] sm:$0xff]
        %v197 = vld [vmem:[%s117 + $0x1d8] sm:$0xff]
        %v198 = vld [vmem:[%s117 + $0x1e0] sm:$0xff]
        %v199 = vld [vmem:[%s117 + $0x1e8] sm:$0xff]
        %v200 = vld [vmem:[%s117 + $0x1f0] sm:$0xff]
        %v201 = vld [vmem:[%s117 + $0x1f8] sm:$0xff]
        %v202 = vld [vmem:[%s117 + $0x200] sm:$0xff]
        %v203 = vld [vmem:[%s117 + $0x208] sm:$0xff]
        %v204 = vld [vmem:[%s117 + $0x210] sm:$0xff]
        %v205 = vld [vmem:[%s117 + $0x218] sm:$0xff]
        %v206 = vld [vmem:[%s117 + $0x220] sm:$0xff]
        %v207 = vld [vmem:[%s117 + $0x228] sm:$0xff]
        %v208 = vld [vmem:[%s117 + $0x230] sm:$0xff]
        %v209 = vld [vmem:[%s117 + $0x238] sm:$0xff]
        %v210 = vld [vmem:[%s117 + $0x240] sm:$0xff]
        %v211 = vld [vmem:[%s117 + $0x248] sm:$0xff]
        %v212 = vld [vmem:[%s117 + $0x250] sm:$0xff]
        %v213 = vld [vmem:[%s117 + $0x258] sm:$0xff]
        %v214 = vld [vmem:[%s117 + $0x260] sm:$0xff]
        %v215 = vld [vmem:[%s117 + $0x268] sm:$0xff]
        %v216 = vld [vmem:[%s117 + $0x270] sm:$0xff]
        %v217 = vld [vmem:[%s117 + $0x278] sm:$0xff]
        %v218 = vld [vmem:[%s117 + $0x280] sm:$0xff]
        %v219 = vld [vmem:[%s117 + $0x288] sm:$0xff]
        %v220 = vld [vmem:[%s117 + $0x290] sm:$0xff]
        %v221 = vld [vmem:[%s117 + $0x298] sm:$0xff]
        %v222 = vld [vmem:[%s117 + $0x2a0] sm:$0xff]
        %v223 = vld [vmem:[%s117 + $0x2a8] sm:$0xff]
        %v224 = vld [vmem:[%s117 + $0x2b0] sm:$0xff]
        %v225 = vld [vmem:[%s117 + $0x2b8] sm:$0xff]
        %v226 = vld [vmem:[%s117 + $0x2c0] sm:$0xff]
        %v227 = vld [vmem:[%s117 + $0x2c8] sm:$0xff]
        %v228 = vld [vmem:[%s117 + $0x2d0] sm:$0xff]
        %v229 = vld [vmem:[%s117 + $0x2d8] sm:$0xff]
        %v230 = vld [vmem:[%s117 + $0x2e0] sm:$0xff]
        %v231 = vld [vmem:[%s117 + $0x2e8] sm:$0xff]
        %v232 = vld [vmem:[%s117 + $0x2f0] sm:$0xff]
        %v233 = vld [vmem:[%s117 + $0x2f8] sm:$0xff]
        %v234 = vld [vmem:[%s117 + $0x300] sm:$0xff]
        %v235 = vld [vmem:[%s117 + $0x308] sm:$0xff]
        %v236 = vld [vmem:[%s117 + $0x310] sm:$0xff]
        %v237 = vld [vmem:[%s117 + $0x318] sm:$0xff]
        %v238 = vld [vmem:[%s117 + $0x320] sm:$0xff]
        %v239 = vld [vmem:[%s117 + $0x328] sm:$0xff]
        %v240 = vld [vmem:[%s117 + $0x330] sm:$0xff]
        %v241 = vld [vmem:[%s117 + $0x338] sm:$0xff]
        %v242 = vld [vmem:[%s117 + $0x340] sm:$0xff]
        %v243 = vld [vmem:[%s117 + $0x348] sm:$0xff]
        %v244 = vld [vmem:[%s117 + $0x350] sm:$0xff]
        %v245 = vld [vmem:[%s117 + $0x358] sm:$0xff]
        %v246 = vld [vmem:[%s117 + $0x360] sm:$0xff]
        %v247 = vld [vmem:[%s117 + $0x368] sm:$0xff]
        %v248 = vld [vmem:[%s117 + $0x370] sm:$0xff]
        %v249 = vld [vmem:[%s117 + $0x378] sm:$0xff]
        %v250 = vld [vmem:[%s117 + $0x380] sm:$0xff]
        %v251 = vld [vmem:[%s117 + $0x388] sm:$0xff]
        %v252 = vld [vmem:[%s117 + $0x390] sm:$0xff]
        %v253 = vld [vmem:[%s117 + $0x398] sm:$0xff]
        %v254 = vld [vmem:[%s117 + $0x3a0] sm:$0xff]
        %v255 = vld [vmem:[%s117 + $0x3a8] sm:$0xff]
        %v256 = vld [vmem:[%s117 + $0x3b0] sm:$0xff]
        %v257 = vld [vmem:[%s117 + $0x3b8] sm:$0xff]
        %v258 = vld [vmem:[%s117 + $0x3c0] sm:$0xff]
        %v259 = vld [vmem:[%s117 + $0x3c8] sm:$0xff]
        %v260 = vld [vmem:[%s117 + $0x3d0] sm:$0xff]
        %v261 = vld [vmem:[%s117 + $0x3d8] sm:$0xff]
        %v262 = vld [vmem:[%s117 + $0x3e0] sm:$0xff]
        %v263 = vld [vmem:[%s117 + $0x3e8] sm:$0xff]
        %v264 = vld [vmem:[%s117 + $0x3f0] sm:$0xff]
        %v265 = vld [vmem:[%s117 + $0x3f8] sm:$0xff]
        %v266 = vld [vmem:[%s117 + $0x400] sm:$0xff]
        %v267 = vld [vmem:[%s117 + $0x408] sm:$0xff]
        %v268 = vld [vmem:[%s117 + $0x410] sm:$0xff]
        %v269 = vld [vmem:[%s117 + $0x418] sm:$0xff]
        %v270 = vld [vmem:[%s117 + $0x420] sm:$0xff]
        %v271 = vld [vmem:[%s117 + $0x428] sm:$0xff]
        %v272 = vld [vmem:[%s117 + $0x430] sm:$0xff]
        %v273 = vld [vmem:[%s117 + $0x438] sm:$0xff]
        %v274 = vld [vmem:[%s117 + $0x440] sm:$0xff]
        %v275 = vld [vmem:[%s117 + $0x448] sm:$0xff]
        %v276 = vld [vmem:[%s117 + $0x450] sm:$0xff]
        %v277 = vld [vmem:[%s117 + $0x458] sm:$0xff]
        %v278 = vld [vmem:[%s117 + $0x460] sm:$0xff]
        %v279 = vld [vmem:[%s117 + $0x468] sm:$0xff]
        %v280 = vld [vmem:[%s117 + $0x470] sm:$0xff]
        %v281 = vld [vmem:[%s117 + $0x478] sm:$0xff]
        %v282 = vld [vmem:[%s117 + $0x480] sm:$0xff]
        %v283 = vld [vmem:[%s117 + $0x488] sm:$0xff]
        %v284 = vld [vmem:[%s117 + $0x490] sm:$0xff]
        %v285 = vld [vmem:[%s117 + $0x498] sm:$0xff]
        %v286 = vld [vmem:[%s117 + $0x4a0] sm:$0xff]
        %v287 = vld [vmem:[%s117 + $0x4a8] sm:$0xff]
        %v288 = vld [vmem:[%s117 + $0x4b0] sm:$0xff]
        %v289 = vld [vmem:[%s117 + $0x4b8] sm:$0xff]
        %v290 = vld [vmem:[%s117 + $0x4c0] sm:$0xff]
        %v291 = vld [vmem:[%s117 + $0x4c8] sm:$0xff]
        %v292 = vld [vmem:[%s117 + $0x4d0] sm:$0xff]
        %v293 = vld [vmem:[%s117 + $0x4d8] sm:$0xff]
        %v294 = vld [vmem:[%s117 + $0x4e0] sm:$0xff]
        %v295 = vld [vmem:[%s117 + $0x4e8] sm:$0xff]
        %v296 = vld [vmem:[%s117 + $0x4f0] sm:$0xff]
        %v297 = vld [vmem:[%s117 + $0x4f8] sm:$0xff]
        %v298 = vld [vmem:[%s117 + $0x500] sm:$0xff]
        %v299 = vld [vmem:[%s117 + $0x508] sm:$0xff]
        %v300 = vld [vmem:[%s117 + $0x510] sm:$0xff]
        %v301 = vld [vmem:[%s117 + $0x518] sm:$0xff]
        %v302 = vld [vmem:[%s117 + $0x520] sm:$0xff]
        %v303 = vld [vmem:[%s117 + $0x528] sm:$0xff]
        %v304 = vld [vmem:[%s117 + $0x530] sm:$0xff]
        %v305 = vld [vmem:[%s117 + $0x538] sm:$0xff]
        %v306 = vld [vmem:[%s117 + $0x540] sm:$0xff]
        %v307 = vld [vmem:[%s117 + $0x548] sm:$0xff]
        %v308 = vld [vmem:[%s117 + $0x550] sm:$0xff]
        %v309 = vld [vmem:[%s117 + $0x558] sm:$0xff]
        %v310 = vld [vmem:[%s117 + $0x560] sm:$0xff]
        %v311 = vld [vmem:[%s117 + $0x568] sm:$0xff]
        %v312 = vld [vmem:[%s117 + $0x570] sm:$0xff]
        %v313 = vld [vmem:[%s117 + $0x578] sm:$0xff]
        %v314 = vld [vmem:[%s117 + $0x580] sm:$0xff]
        %v315 = vld [vmem:[%s117 + $0x588] sm:$0xff]
        %v316 = vld [vmem:[%s117 + $0x590] sm:$0xff]
        %v317 = vld [vmem:[%s117 + $0x598] sm:$0xff]
        %v318 = vld [vmem:[%s117 + $0x5a0] sm:$0xff]
        %v319 = vld [vmem:[%s117 + $0x5a8] sm:$0xff]
        %v320 = vld [vmem:[%s117 + $0x5b0] sm:$0xff]
        %v321 = vld [vmem:[%s117 + $0x5b8] sm:$0xff]
        %v322 = vld [vmem:[%s117 + $0x5c0] sm:$0xff]
        %v323 = vld [vmem:[%s117 + $0x5c8] sm:$0xff]
        %v324 = vld [vmem:[%s117 + $0x5d0] sm:$0xff]
        %v325 = vld [vmem:[%s117 + $0x5d8] sm:$0xff]
        %v326 = vld [vmem:[%s117 + $0x5e0] sm:$0xff]
        %v327 = vld [vmem:[%s117 + $0x5e8] sm:$0xff]
        %v328 = vld [vmem:[%s117 + $0x5f0] sm:$0xff]
        %v329 = vld [vmem:[%s117 + $0x5f8] sm:$0xff]
        %v330 = vld [vmem:[%s117 + $0x600] sm:$0xff]
        %v331 = vld [vmem:[%s117 + $0x608] sm:$0xff]
        %v332 = vld [vmem:[%s117 + $0x610] sm:$0xff]
        %v333 = vld [vmem:[%s117 + $0x618] sm:$0xff]
        %v334 = vld [vmem:[%s117 + $0x620] sm:$0xff]
        %v335 = vld [vmem:[%s117 + $0x628] sm:$0xff]
        %v336 = vld [vmem:[%s117 + $0x630] sm:$0xff]
        %v337 = vld [vmem:[%s117 + $0x638] sm:$0xff]
        %v338 = vld [vmem:[%s117 + $0x640] sm:$0xff]
        %v339 = vld [vmem:[%s117 + $0x648] sm:$0xff]
        %v340 = vld [vmem:[%s117 + $0x650] sm:$0xff]
        %v341 = vld [vmem:[%s117 + $0x658] sm:$0xff]
        %v342 = vld [vmem:[%s117 + $0x660] sm:$0xff]
        %v343 = vld [vmem:[%s117 + $0x668] sm:$0xff]
        %v344 = vld [vmem:[%s117 + $0x670] sm:$0xff]
        %v345 = vld [vmem:[%s117 + $0x678] sm:$0xff]
        %v346 = vld [vmem:[%s117 + $0x680] sm:$0xff]
        %v347 = vld [vmem:[%s117 + $0x688] sm:$0xff]
        %v348 = vld [vmem:[%s117 + $0x690] sm:$0xff]
        %v349 = vld [vmem:[%s117 + $0x698] sm:$0xff]
        %v350 = vld [vmem:[%s117 + $0x6a0] sm:$0xff]
        %v351 = vld [vmem:[%s117 + $0x6a8] sm:$0xff]
        %v352 = vld [vmem:[%s117 + $0x6b0] sm:$0xff]
        %v353 = vld [vmem:[%s117 + $0x6b8] sm:$0xff]
        %v354 = vld [vmem:[%s117 + $0x6c0] sm:$0xff]
        %v355 = vld [vmem:[%s117 + $0x6c8] sm:$0xff]
        %v356 = vld [vmem:[%s117 + $0x6d0] sm:$0xff]
        %v357 = vld [vmem:[%s117 + $0x6d8] sm:$0xff]
        %v358 = vld [vmem:[%s117 + $0x6e0] sm:$0xff]
        %v359 = vld [vmem:[%s117 + $0x6e8] sm:$0xff]
        %v360 = vld [vmem:[%s117 + $0x6f0] sm:$0xff]
        %v361 = vld [vmem:[%s117 + $0x6f8] sm:$0xff]
        %v362 = vld [vmem:[%s117 + $0x700] sm:$0xff]
        %v363 = vld [vmem:[%s117 + $0x708] sm:$0xff]
        %v364 = vld [vmem:[%s117 + $0x710] sm:$0xff]
        %v365 = vld [vmem:[%s117 + $0x718] sm:$0xff]
        %v366 = vld [vmem:[%s117 + $0x720] sm:$0xff]
        %v367 = vld [vmem:[%s117 + $0x728] sm:$0xff]
        %v368 = vld [vmem:[%s117 + $0x730] sm:$0xff]
        %v369 = vld [vmem:[%s117 + $0x738] sm:$0xff]
        %v370 = vld [vmem:[%s117 + $0x740] sm:$0xff]
        %v371 = vld [vmem:[%s117 + $0x748] sm:$0xff]
        %v372 = vld [vmem:[%s117 + $0x750] sm:$0xff]
        %v373 = vld [vmem:[%s117 + $0x758] sm:$0xff]
        %v374 = vld [vmem:[%s117 + $0x760] sm:$0xff]
        %v375 = vld [vmem:[%s117 + $0x768] sm:$0xff]
        %v376 = vld [vmem:[%s117 + $0x770] sm:$0xff]
        %v377 = vld [vmem:[%s117 + $0x778] sm:$0xff]
        %v378 = vld [vmem:[%s117 + $0x780] sm:$0xff]
        %v379 = vld [vmem:[%s117 + $0x788] sm:$0xff]
        %v380 = vld [vmem:[%s117 + $0x790] sm:$0xff]
        %v381 = vld [vmem:[%s117 + $0x798] sm:$0xff]
        %v382 = vld [vmem:[%s117 + $0x7a0] sm:$0xff]
        %v383 = vld [vmem:[%s117 + $0x7a8] sm:$0xff]
        %v384 = vld [vmem:[%s117 + $0x7b0] sm:$0xff]
        %v385 = vld [vmem:[%s117 + $0x7b8] sm:$0xff]
        %v386 = vld [vmem:[%s117 + $0x7c0] sm:$0xff]
        %v387 = vld [vmem:[%s117 + $0x7c8] sm:$0xff]
        %v388 = vld [vmem:[%s117 + $0x7d0] sm:$0xff]
        %v389 = vld [vmem:[%s117 + $0x7d8] sm:$0xff]
        %v390 = vld [vmem:[%s117 + $0x7e0] sm:$0xff]
        %v391 = vld [vmem:[%s117 + $0x7e8] sm:$0xff]
        %v392 = vld [vmem:[%s117 + $0x7f0] sm:$0xff]
        %v393 = vld [vmem:[%s117 + $0x7f8] sm:$0xff]
        %v394 = vld [vmem:[%s117 + $0x800] sm:$0xff]
        %v395 = vld [vmem:[%s117 + $0x808] sm:$0xff]
        %v396 = vld [vmem:[%s117 + $0x810] sm:$0xff]
        %v397 = vld [vmem:[%s117 + $0x818] sm:$0xff]
        %v398 = vld [vmem:[%s117 + $0x820] sm:$0xff]
        %v399 = vld [vmem:[%s117 + $0x828] sm:$0xff]
        %v400 = vld [vmem:[%s117 + $0x830] sm:$0xff]
        %v401 = vld [vmem:[%s117 + $0x838] sm:$0xff]
        %v402 = vld [vmem:[%s117 + $0x840] sm:$0xff]
        %v403 = vld [vmem:[%s117 + $0x848] sm:$0xff]
        %v404 = vld [vmem:[%s117 + $0x850] sm:$0xff]
        %v405 = vld [vmem:[%s117 + $0x858] sm:$0xff]
        %v406 = vld [vmem:[%s117 + $0x860] sm:$0xff]
        %v407 = vld [vmem:[%s117 + $0x868] sm:$0xff]
        %v408 = vld [vmem:[%s117 + $0x870] sm:$0xff]
        %v409 = vld [vmem:[%s117 + $0x878] sm:$0xff]
        %v410 = vld [vmem:[%s117 + $0x880] sm:$0xff]
        %v411 = vld [vmem:[%s117 + $0x888] sm:$0xff]
        %v412 = vld [vmem:[%s117 + $0x890] sm:$0xff]
        %v413 = vld [vmem:[%s117 + $0x898] sm:$0xff]
        %v414 = vld [vmem:[%s117 + $0x8a0] sm:$0xff]
        %v415 = vld [vmem:[%s117 + $0x8a8] sm:$0xff]
        %v416 = vld [vmem:[%s117 + $0x8b0] sm:$0xff]
        %v417 = vld [vmem:[%s117 + $0x8b8] sm:$0xff]
        %v418 = vld [vmem:[%s117 + $0x8c0] sm:$0xff]
        %v419 = vld [vmem:[%s117 + $0x8c8] sm:$0xff]
        %v420 = vld [vmem:[%s117 + $0x8d0] sm:$0xff]
        %v421 = vld [vmem:[%s117 + $0x8d8] sm:$0xff]
        %v422 = vld [vmem:[%s117 + $0x8e0] sm:$0xff]
        %v423 = vld [vmem:[%s117 + $0x8e8] sm:$0xff]
        %v424 = vld [vmem:[%s117 + $0x8f0] sm:$0xff]
        %v425 = vld [vmem:[%s117 + $0x8f8] sm:$0xff]
        %v426 = vld [vmem:[%s117 + $0x900] sm:$0xff]
        %v427 = vld [vmem:[%s117 + $0x908] sm:$0xff]
        %v428 = vld [vmem:[%s117 + $0x910] sm:$0xff]
        %v429 = vld [vmem:[%s117 + $0x918] sm:$0xff]
        %v430 = vld [vmem:[%s117 + $0x920] sm:$0xff]
        %v431 = vld [vmem:[%s117 + $0x928] sm:$0xff]
        %v432 = vld [vmem:[%s117 + $0x930] sm:$0xff]
        %v433 = vld [vmem:[%s117 + $0x938] sm:$0xff]
        %v434 = vld [vmem:[%s117 + $0x940] sm:$0xff]
        %v435 = vld [vmem:[%s117 + $0x948] sm:$0xff]
        %v436 = vld [vmem:[%s117 + $0x950] sm:$0xff]
        %v437 = vld [vmem:[%s117 + $0x958] sm:$0xff]
        %v438 = vld [vmem:[%s117 + $0x960] sm:$0xff]
        %v439 = vld [vmem:[%s117 + $0x968] sm:$0xff]
        %v440 = vld [vmem:[%s117 + $0x970] sm:$0xff]
        %v441 = vld [vmem:[%s117 + $0x978] sm:$0xff]
        %v442 = vld [vmem:[%s117 + $0x980] sm:$0xff]
        %v443 = vld [vmem:[%s117 + $0x988] sm:$0xff]
        %v444 = vld [vmem:[%s117 + $0x990] sm:$0xff]
        %v445 = vld [vmem:[%s117 + $0x998] sm:$0xff]
        %v446 = vld [vmem:[%s117 + $0x9a0] sm:$0xff]
        %v447 = vld [vmem:[%s117 + $0x9a8] sm:$0xff]
        %v448 = vld [vmem:[%s117 + $0x9b0] sm:$0xff]
        %v449 = vld [vmem:[%s117 + $0x9b8] sm:$0xff]
        %v450 = vld [vmem:[%s117 + $0x9c0] sm:$0xff]
        %v451 = vld [vmem:[%s117 + $0x9c8] sm:$0xff]
        %v452 = vld [vmem:[%s117 + $0x9d0] sm:$0xff]
        %v453 = vld [vmem:[%s117 + $0x9d8] sm:$0xff]
        %v454 = vld [vmem:[%s117 + $0x9e0] sm:$0xff]
        %v455 = vld [vmem:[%s117 + $0x9e8] sm:$0xff]
        %v456 = vld [vmem:[%s117 + $0x9f0] sm:$0xff]
        %v457 = vld [vmem:[%s117 + $0x9f8] sm:$0xff]
        %v458 = vld [vmem:[%s117 + $0xa00] sm:$0xff]
        %v459 = vld [vmem:[%s117 + $0xa08] sm:$0xff]
        %v460 = vld [vmem:[%s117 + $0xa10] sm:$0xff]
        %v461 = vld [vmem:[%s117 + $0xa18] sm:$0xff]
        %v462 = vld [vmem:[%s117 + $0xa20] sm:$0xff]
        %v463 = vld [vmem:[%s117 + $0xa28] sm:$0xff]
        %v464 = vld [vmem:[%s117 + $0xa30] sm:$0xff]
        %v465 = vld [vmem:[%s117 + $0xa38] sm:$0xff]
        %v466 = vld [vmem:[%s117 + $0xa40] sm:$0xff]
        %v467 = vld [vmem:[%s117 + $0xa48] sm:$0xff]
        %v468 = vld [vmem:[%s117 + $0xa50] sm:$0xff]
        %v469 = vld [vmem:[%s117 + $0xa58] sm:$0xff]
        %v470 = vld [vmem:[%s117 + $0xa60] sm:$0xff]
        %v471 = vld [vmem:[%s117 + $0xa68] sm:$0xff]
        %v472 = vld [vmem:[%s117 + $0xa70] sm:$0xff]
        %v473 = vld [vmem:[%s117 + $0xa78] sm:$0xff]
        %v474 = vld [vmem:[%s117 + $0xa80] sm:$0xff]
        %v475 = vld [vmem:[%s117 + $0xa88] sm:$0xff]
        %v476 = vld [vmem:[%s117 + $0xa90] sm:$0xff]
        %v477 = vld [vmem:[%s117 + $0xa98] sm:$0xff]
        %v478 = vld [vmem:[%s117 + $0xaa0] sm:$0xff]
        %v479 = vld [vmem:[%s117 + $0xaa8] sm:$0xff]
        %v480 = vld [vmem:[%s117 + $0xab0] sm:$0xff]
        %v481 = vld [vmem:[%s117 + $0xab8] sm:$0xff]
        %v482 = vld [vmem:[%s117 + $0xac0] sm:$0xff]
        %v483 = vld [vmem:[%s117 + $0xac8] sm:$0xff]
        %v484 = vld [vmem:[%s117 + $0xad0] sm:$0xff]
        %v485 = vld [vmem:[%s117 + $0xad8] sm:$0xff]
        %v486 = vld [vmem:[%s117 + $0xae0] sm:$0xff]
        %v487 = vld [vmem:[%s117 + $0xae8] sm:$0xff]
        %v488 = vld [vmem:[%s117 + $0xaf0] sm:$0xff]
        %v489 = vld [vmem:[%s117 + $0xaf8] sm:$0xff]
        %v490 = vld [vmem:[%s117 + $0xb00] sm:$0xff]
        %v491 = vld [vmem:[%s117 + $0xb08] sm:$0xff]
        %v492 = vld [vmem:[%s117 + $0xb10] sm:$0xff]
        %v493 = vld [vmem:[%s117 + $0xb18] sm:$0xff]
        %v494 = vld [vmem:[%s117 + $0xb20] sm:$0xff]
        %v495 = vld [vmem:[%s117 + $0xb28] sm:$0xff]
        %v496 = vld [vmem:[%s117 + $0xb30] sm:$0xff]
        %v497 = vld [vmem:[%s117 + $0xb38] sm:$0xff]
        %v498 = vld [vmem:[%s117 + $0xb40] sm:$0xff]
        %v499 = vld [vmem:[%s117 + $0xb48] sm:$0xff]
        %v500 = vld [vmem:[%s117 + $0xb50] sm:$0xff]
        %v501 = vld [vmem:[%s117 + $0xb58] sm:$0xff]
        %v502 = vld [vmem:[%s117 + $0xb60] sm:$0xff]
        %v503 = vld [vmem:[%s117 + $0xb68] sm:$0xff]
        %v504 = vld [vmem:[%s117 + $0xb70] sm:$0xff]
        %v505 = vld [vmem:[%s117 + $0xb78] sm:$0xff]
        %v506 = vld [vmem:[%s117 + $0xb80] sm:$0xff]
        %v507 = vld [vmem:[%s117 + $0xb88] sm:$0xff]
        %v508 = vld [vmem:[%s117 + $0xb90] sm:$0xff]
        %v509 = vld [vmem:[%s117 + $0xb98] sm:$0xff]
        %v510 = vld [vmem:[%s117 + $0xba0] sm:$0xff]
        %v511 = vld [vmem:[%s117 + $0xba8] sm:$0xff]
        %v512 = vld [vmem:[%s117 + $0xbb0] sm:$0xff]
        %v513 = vld [vmem:[%s117 + $0xbb8] sm:$0xff]
        %v514 = vld [vmem:[%s117 + $0xbc0] sm:$0xff]
        %v515 = vld [vmem:[%s117 + $0xbc8] sm:$0xff]
        %v516 = vld [vmem:[%s117 + $0xbd0] sm:$0xff]
        %v517 = vld [vmem:[%s117 + $0xbd8] sm:$0xff]
        %v518 = vld [vmem:[%s117 + $0xbe0] sm:$0xff]
        %v519 = vld [vmem:[%s117 + $0xbe8] sm:$0xff]
        %v520 = vld [vmem:[%s117 + $0xbf0] sm:$0xff]
        %v521 = vld [vmem:[%s117 + $0xbf8] sm:$0xff]
        %v522 = vld [vmem:[%s117 + $0xc00] sm:$0xff]
        %v523 = vld [vmem:[%s117 + $0xc08] sm:$0xff]
        %v524 = vld [vmem:[%s117 + $0xc10] sm:$0xff]
        %v525 = vld [vmem:[%s117 + $0xc18] sm:$0xff]
        %v526 = vld [vmem:[%s117 + $0xc20] sm:$0xff]
        %v527 = vld [vmem:[%s117 + $0xc28] sm:$0xff]
        %v528 = vld [vmem:[%s117 + $0xc30] sm:$0xff]
        %v529 = vld [vmem:[%s117 + $0xc38] sm:$0xff]
        %v530 = vld [vmem:[%s117 + $0xc40] sm:$0xff]
        %v531 = vld [vmem:[%s117 + $0xc48] sm:$0xff]
        %v532 = vld [vmem:[%s117 + $0xc50] sm:$0xff]
        %v533 = vld [vmem:[%s117 + $0xc58] sm:$0xff]
        %v534 = vld [vmem:[%s117 + $0xc60] sm:$0xff]
        %v535 = vld [vmem:[%s117 + $0xc68] sm:$0xff]
        %v536 = vld [vmem:[%s117 + $0xc70] sm:$0xff]
        %v537 = vld [vmem:[%s117 + $0xc78] sm:$0xff]
        %v538 = vld [vmem:[%s117 + $0xc80] sm:$0xff]
        %v539 = vld [vmem:[%s117 + $0xc88] sm:$0xff]
        %v540 = vld [vmem:[%s117 + $0xc90] sm:$0xff]
        %v541 = vld [vmem:[%s117 + $0xc98] sm:$0xff]
        %v542 = vld [vmem:[%s117 + $0xca0] sm:$0xff]
        %v543 = vld [vmem:[%s117 + $0xca8] sm:$0xff]
        %v544 = vld [vmem:[%s117 + $0xcb0] sm:$0xff]
        %v545 = vld [vmem:[%s117 + $0xcb8] sm:$0xff]
        %v546 = vld [vmem:[%s117 + $0xcc0] sm:$0xff]
        %v547 = vld [vmem:[%s117 + $0xcc8] sm:$0xff]
        %v548 = vld [vmem:[%s117 + $0xcd0] sm:$0xff]
        %v549 = vld [vmem:[%s117 + $0xcd8] sm:$0xff]
        %v550 = vld [vmem:[%s117 + $0xce0] sm:$0xff]
        %v551 = vld [vmem:[%s117 + $0xce8] sm:$0xff]
        %v552 = vld [vmem:[%s117 + $0xcf0] sm:$0xff]
        %v553 = vld [vmem:[%s117 + $0xcf8] sm:$0xff]
        %v554 = vld [vmem:[%s117 + $0xd00] sm:$0xff]
        %v555 = vld [vmem:[%s117 + $0xd08] sm:$0xff]
        %v556 = vld [vmem:[%s117 + $0xd10] sm:$0xff]
        %v557 = vld [vmem:[%s117 + $0xd18] sm:$0xff]
        %v558 = vld [vmem:[%s117 + $0xd20] sm:$0xff]
        %v559 = vld [vmem:[%s117 + $0xd28] sm:$0xff]
        %v560 = vld [vmem:[%s117 + $0xd30] sm:$0xff]
        %v561 = vld [vmem:[%s117 + $0xd38] sm:$0xff]
        %v562 = vld [vmem:[%s117 + $0xd40] sm:$0xff]
        %v563 = vld [vmem:[%s117 + $0xd48] sm:$0xff]
        %v564 = vld [vmem:[%s117 + $0xd50] sm:$0xff]
        %v565 = vld [vmem:[%s117 + $0xd58] sm:$0xff]
        %v566 = vld [vmem:[%s117 + $0xd60] sm:$0xff]
        %v567 = vld [vmem:[%s117 + $0xd68] sm:$0xff]
        %v568 = vld [vmem:[%s117 + $0xd70] sm:$0xff]
        %v569 = vld [vmem:[%s117 + $0xd78] sm:$0xff]
        %v570 = vld [vmem:[%s117 + $0xd80] sm:$0xff]
        %v571 = vld [vmem:[%s117 + $0xd88] sm:$0xff]
        %v572 = vld [vmem:[%s117 + $0xd90] sm:$0xff]
        %v573 = vld [vmem:[%s117 + $0xd98] sm:$0xff]
        %v574 = vld [vmem:[%s117 + $0xda0] sm:$0xff]
        %v575 = vld [vmem:[%s117 + $0xda8] sm:$0xff]
        %v576 = vld [vmem:[%s117 + $0xdb0] sm:$0xff]
        %v577 = vld [vmem:[%s117 + $0xdb8] sm:$0xff]
        %v578 = vld [vmem:[%s117 + $0xdc0] sm:$0xff]
        %v579 = vld [vmem:[%s117 + $0xdc8] sm:$0xff]
        %v580 = vld [vmem:[%s117 + $0xdd0] sm:$0xff]
        %v581 = vld [vmem:[%s117 + $0xdd8] sm:$0xff]
        %v582 = vld [vmem:[%s117 + $0xde0] sm:$0xff]
        %v583 = vld [vmem:[%s117 + $0xde8] sm:$0xff]
        %v584 = vld [vmem:[%s117 + $0xdf0] sm:$0xff]
        %v585 = vld [vmem:[%s117 + $0xdf8] sm:$0xff]
        %v586 = vld [vmem:[%s117 + $0xe00] sm:$0xff]
        %v587 = vld [vmem:[%s117 + $0xe08] sm:$0xff]
        %v588 = vld [vmem:[%s117 + $0xe10] sm:$0xff]
        %v589 = vld [vmem:[%s117 + $0xe18] sm:$0xff]
        %v590 = vld [vmem:[%s117 + $0xe20] sm:$0xff]
        %v591 = vld [vmem:[%s117 + $0xe28] sm:$0xff]
        %v592 = vld [vmem:[%s117 + $0xe30] sm:$0xff]
        %v593 = vld [vmem:[%s117 + $0xe38] sm:$0xff]
        %v594 = vld [vmem:[%s117 + $0xe40] sm:$0xff]
        %v595 = vld [vmem:[%s117 + $0xe48] sm:$0xff]
        %v596 = vld [vmem:[%s117 + $0xe50] sm:$0xff]
        %v597 = vld [vmem:[%s117 + $0xe58] sm:$0xff]
        %v598 = vld [vmem:[%s117 + $0xe60] sm:$0xff]
        %v599 = vld [vmem:[%s117 + $0xe68] sm:$0xff]
        %v600 = vld [vmem:[%s117 + $0xe70] sm:$0xff]
        %v601 = vld [vmem:[%s117 + $0xe78] sm:$0xff]
        %v602 = vld [vmem:[%s117 + $0xe80] sm:$0xff]
        %v603 = vld [vmem:[%s117 + $0xe88] sm:$0xff]
        %v604 = vld [vmem:[%s117 + $0xe90] sm:$0xff]
        %v605 = vld [vmem:[%s117 + $0xe98] sm:$0xff]
        %v606 = vld [vmem:[%s117 + $0xea0] sm:$0xff]
        %v607 = vld [vmem:[%s117 + $0xea8] sm:$0xff]
        %v608 = vld [vmem:[%s117 + $0xeb0] sm:$0xff]
        %v609 = vld [vmem:[%s117 + $0xeb8] sm:$0xff]
        %v610 = vld [vmem:[%s117 + $0xec0] sm:$0xff]
        %v611 = vld [vmem:[%s117 + $0xec8] sm:$0xff]
        %v612 = vld [vmem:[%s117 + $0xed0] sm:$0xff]
        %v613 = vld [vmem:[%s117 + $0xed8] sm:$0xff]
        %v614 = vld [vmem:[%s117 + $0xee0] sm:$0xff]
        %v615 = vld [vmem:[%s117 + $0xee8] sm:$0xff]
        %v616 = vld [vmem:[%s117 + $0xef0] sm:$0xff]
        %v617 = vld [vmem:[%s117 + $0xef8] sm:$0xff]
        %v618 = vld [vmem:[%s117 + $0xf00] sm:$0xff]
        %v619 = vld [vmem:[%s117 + $0xf08] sm:$0xff]
        %v620 = vld [vmem:[%s117 + $0xf10] sm:$0xff]
        %v621 = vld [vmem:[%s117 + $0xf18] sm:$0xff]
        %v622 = vld [vmem:[%s117 + $0xf20] sm:$0xff]
        %v623 = vld [vmem:[%s117 + $0xf28] sm:$0xff]
        %v624 = vld [vmem:[%s117 + $0xf30] sm:$0xff]
        %v625 = vld [vmem:[%s117 + $0xf38] sm:$0xff]
        %v626 = vld [vmem:[%s117 + $0xf40] sm:$0xff]
        %v627 = vld [vmem:[%s117 + $0xf48] sm:$0xff]
        %v628 = vld [vmem:[%s117 + $0xf50] sm:$0xff]
        %v629 = vld [vmem:[%s117 + $0xf58] sm:$0xff]
        %v630 = vld [vmem:[%s117 + $0xf60] sm:$0xff]
        %v631 = vld [vmem:[%s117 + $0xf68] sm:$0xff]
        %v632 = vld [vmem:[%s117 + $0xf70] sm:$0xff]
        %v633 = vld [vmem:[%s117 + $0xf78] sm:$0xff]
        %v634 = vld [vmem:[%s117 + $0xf80] sm:$0xff]
        %v635 = vld [vmem:[%s117 + $0xf88] sm:$0xff]
        %v636 = vld [vmem:[%s117 + $0xf90] sm:$0xff]
        %v637 = vld [vmem:[%s117 + $0xf98] sm:$0xff]
        %v638 = vld [vmem:[%s117 + $0xfa0] sm:$0xff]
        %v639 = vld [vmem:[%s117 + $0xfa8] sm:$0xff]
        %v640 = vld [vmem:[%s117 + $0xfb0] sm:$0xff]
        %v641 = vld [vmem:[%s117 + $0xfb8] sm:$0xff]
        %v642 = vld [vmem:[%s117 + $0xfc0] sm:$0xff]
        %v643 = vld [vmem:[%s117 + $0xfc8] sm:$0xff]
        %v644 = vld [vmem:[%s117 + $0xfd0] sm:$0xff]
        %v645 = vld [vmem:[%s117 + $0xfd8] sm:$0xff]
        %v646 = vld [vmem:[%s117 + $0xfe0] sm:$0xff]
        %v647 = vld [vmem:[%s117 + $0xfe8] sm:$0xff]
        %v648 = vld [vmem:[%s117 + $0xff0] sm:$0xff]
        %v649 = vld [vmem:[%s117 + $0xff8] sm:$0xff]
        %v650 = vmul.f32 %v138, 0.2
        %v651 = vmul.f32 %v139, 0.2
        %v652 = vmul.f32 %v140, 0.2
        %v653 = vmul.f32 %v141, 0.2
        %v654 = vmul.f32 %v142, 0.2
        %v655 = vmul.f32 %v143, 0.2
        %v656 = vmul.f32 %v144, 0.2
        %v657 = vmul.f32 %v145, 0.2
        %v658 = vmul.f32 %v146, 0.2
        %v659 = vmul.f32 %v147, 0.2
        %v660 = vmul.f32 %v148, 0.2
        %v661 = vmul.f32 %v149, 0.2
        %v662 = vmul.f32 %v150, 0.2
        %v663 = vmul.f32 %v151, 0.2
        %v664 = vmul.f32 %v152, 0.2
        %v665 = vmul.f32 %v153, 0.2
        %v666 = vmul.f32 %v154, 0.2
        %v667 = vmul.f32 %v155, 0.2
        %v668 = vmul.f32 %v156, 0.2
        %v669 = vmul.f32 %v157, 0.2
        %v670 = vmul.f32 %v158, 0.2
        %v671 = vmul.f32 %v159, 0.2
        %v672 = vmul.f32 %v160, 0.2
        %v673 = vmul.f32 %v161, 0.2
        %v674 = vmul.f32 %v162, 0.2
        %v675 = vmul.f32 %v163, 0.2
        %v676 = vmul.f32 %v164, 0.2
        %v677 = vmul.f32 %v165, 0.2
        %v678 = vmul.f32 %v166, 0.2
        %v679 = vmul.f32 %v167, 0.2
        %v680 = vmul.f32 %v168, 0.2
        %v681 = vmul.f32 %v169, 0.2
        %v682 = vmul.f32 %v170, 0.2
        %v683 = vmul.f32 %v171, 0.2
        %v684 = vmul.f32 %v172, 0.2
        %v685 = vmul.f32 %v173, 0.2
        %v686 = vmul.f32 %v174, 0.2
        %v687 = vmul.f32 %v175, 0.2
        %v688 = vmul.f32 %v176, 0.2
        %v689 = vmul.f32 %v177, 0.2
        %v690 = vmul.f32 %v178, 0.2
        %v691 = vmul.f32 %v179, 0.2
        %v692 = vmul.f32 %v180, 0.2
        %v693 = vmul.f32 %v181, 0.2
        %v694 = vmul.f32 %v182, 0.2
        %v695 = vmul.f32 %v183, 0.2
        %v696 = vmul.f32 %v184, 0.2
        %v697 = vmul.f32 %v185, 0.2
        %v698 = vmul.f32 %v186, 0.2
        %v699 = vmul.f32 %v187, 0.2
        %v700 = vmul.f32 %v188, 0.2
        %v701 = vmul.f32 %v189, 0.2
        %v702 = vmul.f32 %v190, 0.2
        %v703 = vmul.f32 %v191, 0.2
        %v704 = vmul.f32 %v192, 0.2
        %v705 = vmul.f32 %v193, 0.2
        %v706 = vmul.f32 %v194, 0.2
        %v707 = vmul.f32 %v195, 0.2
        %v708 = vmul.f32 %v196, 0.2
        %v709 = vmul.f32 %v197, 0.2
        %v710 = vmul.f32 %v198, 0.2
        %v711 = vmul.f32 %v199, 0.2
        %v712 = vmul.f32 %v200, 0.2
        %v713 = vmul.f32 %v201, 0.2
        %v714 = vmul.f32 %v202, 0.2
        %v715 = vmul.f32 %v203, 0.2
        %v716 = vmul.f32 %v204, 0.2
        %v717 = vmul.f32 %v205, 0.2
        %v718 = vmul.f32 %v206, 0.2
        %v719 = vmul.f32 %v207, 0.2
        %v720 = vmul.f32 %v208, 0.2
        %v721 = vmul.f32 %v209, 0.2
        %v722 = vmul.f32 %v210, 0.2
        %v723 = vmul.f32 %v211, 0.2
        %v724 = vmul.f32 %v212, 0.2
        %v725 = vmul.f32 %v213, 0.2
        %v726 = vmul.f32 %v214, 0.2
        %v727 = vmul.f32 %v215, 0.2
        %v728 = vmul.f32 %v216, 0.2
        %v729 = vmul.f32 %v217, 0.2
        %v730 = vmul.f32 %v218, 0.2
        %v731 = vmul.f32 %v219, 0.2
        %v732 = vmul.f32 %v220, 0.2
        %v733 = vmul.f32 %v221, 0.2
        %v734 = vmul.f32 %v222, 0.2
        %v735 = vmul.f32 %v223, 0.2
        %v736 = vmul.f32 %v224, 0.2
        %v737 = vmul.f32 %v225, 0.2
        %v738 = vmul.f32 %v226, 0.2
        %v739 = vmul.f32 %v227, 0.2
        %v740 = vmul.f32 %v228, 0.2
        %v741 = vmul.f32 %v229, 0.2
        %v742 = vmul.f32 %v230, 0.2
        %v743 = vmul.f32 %v231, 0.2
        %v744 = vmul.f32 %v232, 0.2
        %v745 = vmul.f32 %v233, 0.2
        %v746 = vmul.f32 %v234, 0.2
        %v747 = vmul.f32 %v235, 0.2
        %v748 = vmul.f32 %v236, 0.2
        %v749 = vmul.f32 %v237, 0.2
        %v750 = vmul.f32 %v238, 0.2
        %v751 = vmul.f32 %v239, 0.2
        %v752 = vmul.f32 %v240, 0.2
        %v753 = vmul.f32 %v241, 0.2
        %v754 = vmul.f32 %v242, 0.2
        %v755 = vmul.f32 %v243, 0.2
        %v756 = vmul.f32 %v244, 0.2
        %v757 = vmul.f32 %v245, 0.2
        %v758 = vmul.f32 %v246, 0.2
        %v759 = vmul.f32 %v247, 0.2
        %v760 = vmul.f32 %v248, 0.2
        %v761 = vmul.f32 %v249, 0.2
        %v762 = vmul.f32 %v250, 0.2
        %v763 = vmul.f32 %v251, 0.2
        %v764 = vmul.f32 %v252, 0.2
        %v765 = vmul.f32 %v253, 0.2
        %v766 = vmul.f32 %v254, 0.2
        %v767 = vmul.f32 %v255, 0.2
        %v768 = vmul.f32 %v256, 0.2
        %v769 = vmul.f32 %v257, 0.2
        %v770 = vmul.f32 %v258, 0.2
        %v771 = vmul.f32 %v259, 0.2
        %v772 = vmul.f32 %v260, 0.2
        %v773 = vmul.f32 %v261, 0.2
        %v774 = vmul.f32 %v262, 0.2
        %v775 = vmul.f32 %v263, 0.2
        %v776 = vmul.f32 %v264, 0.2
        %v777 = vmul.f32 %v265, 0.2
        %v778 = vmul.f32 %v266, 0.2
        %v779 = vmul.f32 %v267, 0.2
        %v780 = vmul.f32 %v268, 0.2
        %v781 = vmul.f32 %v269, 0.2
        %v782 = vmul.f32 %v270, 0.2
        %v783 = vmul.f32 %v271, 0.2
        %v784 = vmul.f32 %v272, 0.2
        %v785 = vmul.f32 %v273, 0.2
        %v786 = vmul.f32 %v274, 0.2
        %v787 = vmul.f32 %v275, 0.2
        %v788 = vmul.f32 %v276, 0.2
        %v789 = vmul.f32 %v277, 0.2
        %v790 = vmul.f32 %v278, 0.2
        %v791 = vmul.f32 %v279, 0.2
        %v792 = vmul.f32 %v280, 0.2
        %v793 = vmul.f32 %v281, 0.2
        %v794 = vmul.f32 %v282, 0.2
        %v795 = vmul.f32 %v283, 0.2
        %v796 = vmul.f32 %v284, 0.2
        %v797 = vmul.f32 %v285, 0.2
        %v798 = vmul.f32 %v286, 0.2
        %v799 = vmul.f32 %v287, 0.2
        %v800 = vmul.f32 %v288, 0.2
        %v801 = vmul.f32 %v289, 0.2
        %v802 = vmul.f32 %v290, 0.2
        %v803 = vmul.f32 %v291, 0.2
        %v804 = vmul.f32 %v292, 0.2
        %v805 = vmul.f32 %v293, 0.2
        %v806 = vmul.f32 %v294, 0.2
        %v807 = vmul.f32 %v295, 0.2
        %v808 = vmul.f32 %v296, 0.2
        %v809 = vmul.f32 %v297, 0.2
        %v810 = vmul.f32 %v298, 0.2
        %v811 = vmul.f32 %v299, 0.2
        %v812 = vmul.f32 %v300, 0.2
        %v813 = vmul.f32 %v301, 0.2
        %v814 = vmul.f32 %v302, 0.2
        %v815 = vmul.f32 %v303, 0.2
        %v816 = vmul.f32 %v304, 0.2
        %v817 = vmul.f32 %v305, 0.2
        %v818 = vmul.f32 %v306, 0.2
        %v819 = vmul.f32 %v307, 0.2
        %v820 = vmul.f32 %v308, 0.2
        %v821 = vmul.f32 %v309, 0.2
        %v822 = vmul.f32 %v310, 0.2
        %v823 = vmul.f32 %v311, 0.2
        %v824 = vmul.f32 %v312, 0.2
        %v825 = vmul.f32 %v313, 0.2
        %v826 = vmul.f32 %v314, 0.2
        %v827 = vmul.f32 %v315, 0.2
        %v828 = vmul.f32 %v316, 0.2
        %v829 = vmul.f32 %v317, 0.2
        %v830 = vmul.f32 %v318, 0.2
        %v831 = vmul.f32 %v319, 0.2
        %v832 = vmul.f32 %v320, 0.2
        %v833 = vmul.f32 %v321, 0.2
        %v834 = vmul.f32 %v322, 0.2
        %v835 = vmul.f32 %v323, 0.2
        %v836 = vmul.f32 %v324, 0.2
        %v837 = vmul.f32 %v325, 0.2
        %v838 = vmul.f32 %v326, 0.2
        %v839 = vmul.f32 %v327, 0.2
        %v840 = vmul.f32 %v328, 0.2
        %v841 = vmul.f32 %v329, 0.2
        %v842 = vmul.f32 %v330, 0.2
        %v843 = vmul.f32 %v331, 0.2
        %v844 = vmul.f32 %v332, 0.2
        %v845 = vmul.f32 %v333, 0.2
        %v846 = vmul.f32 %v334, 0.2
        %v847 = vmul.f32 %v335, 0.2
        %v848 = vmul.f32 %v336, 0.2
        %v849 = vmul.f32 %v337, 0.2
        %v850 = vmul.f32 %v338, 0.2
        %v851 = vmul.f32 %v339, 0.2
        %v852 = vmul.f32 %v340, 0.2
        %v853 = vmul.f32 %v341, 0.2
        %v854 = vmul.f32 %v342, 0.2
        %v855 = vmul.f32 %v343, 0.2
        %v856 = vmul.f32 %v344, 0.2
        %v857 = vmul.f32 %v345, 0.2
        %v858 = vmul.f32 %v346, 0.2
        %v859 = vmul.f32 %v347, 0.2
        %v860 = vmul.f32 %v348, 0.2
        %v861 = vmul.f32 %v349, 0.2
        %v862 = vmul.f32 %v350, 0.2
        %v863 = vmul.f32 %v351, 0.2
        %v864 = vmul.f32 %v352, 0.2
        %v865 = vmul.f32 %v353, 0.2
        %v866 = vmul.f32 %v354, 0.2
        %v867 = vmul.f32 %v355, 0.2
        %v868 = vmul.f32 %v356, 0.2
        %v869 = vmul.f32 %v357, 0.2
        %v870 = vmul.f32 %v358, 0.2
        %v871 = vmul.f32 %v359, 0.2
        %v872 = vmul.f32 %v360, 0.2
        %v873 = vmul.f32 %v361, 0.2
        %v874 = vmul.f32 %v362, 0.2
        %v875 = vmul.f32 %v363, 0.2
        %v876 = vmul.f32 %v364, 0.2
        %v877 = vmul.f32 %v365, 0.2
        %v878 = vmul.f32 %v366, 0.2
        %v879 = vmul.f32 %v367, 0.2
        %v880 = vmul.f32 %v368, 0.2
        %v881 = vmul.f32 %v369, 0.2
        %v882 = vmul.f32 %v370, 0.2
        %v883 = vmul.f32 %v371, 0.2
        %v884 = vmul.f32 %v372, 0.2
        %v885 = vmul.f32 %v373, 0.2
        %v886 = vmul.f32 %v374, 0.2
        %v887 = vmul.f32 %v375, 0.2
        %v888 = vmul.f32 %v376, 0.2
        %v889 = vmul.f32 %v377, 0.2
        %v890 = vmul.f32 %v378, 0.2
        %v891 = vmul.f32 %v379, 0.2
        %v892 = vmul.f32 %v380, 0.2
        %v893 = vmul.f32 %v381, 0.2
        %v894 = vmul.f32 %v382, 0.2
        %v895 = vmul.f32 %v383, 0.2
        %v896 = vmul.f32 %v384, 0.2
        %v897 = vmul.f32 %v385, 0.2
        %v898 = vmul.f32 %v386, 0.2
        %v899 = vmul.f32 %v387, 0.2
        %v900 = vmul.f32 %v388, 0.2
        %v901 = vmul.f32 %v389, 0.2
        %v902 = vmul.f32 %v390, 0.2
        %v903 = vmul.f32 %v391, 0.2
        %v904 = vmul.f32 %v392, 0.2
        %v905 = vmul.f32 %v393, 0.2
        %v906 = vmul.f32 %v394, 0.2
        %v907 = vmul.f32 %v395, 0.2
        %v908 = vmul.f32 %v396, 0.2
        %v909 = vmul.f32 %v397, 0.2
        %v910 = vmul.f32 %v398, 0.2
        %v911 = vmul.f32 %v399, 0.2
        %v912 = vmul.f32 %v400, 0.2
        %v913 = vmul.f32 %v401, 0.2
        %v914 = vmul.f32 %v402, 0.2
        %v915 = vmul.f32 %v403, 0.2
        %v916 = vmul.f32 %v404, 0.2
        %v917 = vmul.f32 %v405, 0.2
        %v918 = vmul.f32 %v406, 0.2
        %v919 = vmul.f32 %v407, 0.2
        %v920 = vmul.f32 %v408, 0.2
        %v921 = vmul.f32 %v409, 0.2
        %v922 = vmul.f32 %v410, 0.2
        %v923 = vmul.f32 %v411, 0.2
        %v924 = vmul.f32 %v412, 0.2
        %v925 = vmul.f32 %v413, 0.2
        %v926 = vmul.f32 %v414, 0.2
        %v927 = vmul.f32 %v415, 0.2
        %v928 = vmul.f32 %v416, 0.2
        %v929 = vmul.f32 %v417, 0.2
        %v930 = vmul.f32 %v418, 0.2
        %v931 = vmul.f32 %v419, 0.2
        %v932 = vmul.f32 %v420, 0.2
        %v933 = vmul.f32 %v421, 0.2
        %v934 = vmul.f32 %v422, 0.2
        %v935 = vmul.f32 %v423, 0.2
        %v936 = vmul.f32 %v424, 0.2
        %v937 = vmul.f32 %v425, 0.2
        %v938 = vmul.f32 %v426, 0.2
        %v939 = vmul.f32 %v427, 0.2
        %v940 = vmul.f32 %v428, 0.2
        %v941 = vmul.f32 %v429, 0.2
        %v942 = vmul.f32 %v430, 0.2
        %v943 = vmul.f32 %v431, 0.2
        %v944 = vmul.f32 %v432, 0.2
        %v945 = vmul.f32 %v433, 0.2
        %v946 = vmul.f32 %v434, 0.2
        %v947 = vmul.f32 %v435, 0.2
        %v948 = vmul.f32 %v436, 0.2
        %v949 = vmul.f32 %v437, 0.2
        %v950 = vmul.f32 %v438, 0.2
        %v951 = vmul.f32 %v439, 0.2
        %v952 = vmul.f32 %v440, 0.2
        %v953 = vmul.f32 %v441, 0.2
        %v954 = vmul.f32 %v442, 0.2
        %v955 = vmul.f32 %v443, 0.2
        %v956 = vmul.f32 %v444, 0.2
        %v957 = vmul.f32 %v445, 0.2
        %v958 = vmul.f32 %v446, 0.2
        %v959 = vmul.f32 %v447, 0.2
        %v960 = vmul.f32 %v448, 0.2
        %v961 = vmul.f32 %v449, 0.2
        %v962 = vmul.f32 %v450, 0.2
        %v963 = vmul.f32 %v451, 0.2
        %v964 = vmul.f32 %v452, 0.2
        %v965 = vmul.f32 %v453, 0.2
        %v966 = vmul.f32 %v454, 0.2
        %v967 = vmul.f32 %v455, 0.2
        %v968 = vmul.f32 %v456, 0.2
        %v969 = vmul.f32 %v457, 0.2
        %v970 = vmul.f32 %v458, 0.2
        %v971 = vmul.f32 %v459, 0.2
        %v972 = vmul.f32 %v460, 0.2
        %v973 = vmul.f32 %v461, 0.2
        %v974 = vmul.f32 %v462, 0.2
        %v975 = vmul.f32 %v463, 0.2
        %v976 = vmul.f32 %v464, 0.2
        %v977 = vmul.f32 %v465, 0.2
        %v978 = vmul.f32 %v466, 0.2
        %v979 = vmul.f32 %v467, 0.2
        %v980 = vmul.f32 %v468, 0.2
        %v981 = vmul.f32 %v469, 0.2
        %v982 = vmul.f32 %v470, 0.2
        %v983 = vmul.f32 %v471, 0.2
        %v984 = vmul.f32 %v472, 0.2
        %v985 = vmul.f32 %v473, 0.2
        %v986 = vmul.f32 %v474, 0.2
        %v987 = vmul.f32 %v475, 0.2
        %v988 = vmul.f32 %v476, 0.2
        %v989 = vmul.f32 %v477, 0.2
        %v990 = vmul.f32 %v478, 0.2
        %v991 = vmul.f32 %v479, 0.2
        %v992 = vmul.f32 %v480, 0.2
        %v993 = vmul.f32 %v481, 0.2
        %v994 = vmul.f32 %v482, 0.2
        %v995 = vmul.f32 %v483, 0.2
        %v996 = vmul.f32 %v484, 0.2
        %v997 = vmul.f32 %v485, 0.2
        %v998 = vmul.f32 %v486, 0.2
        %v999 = vmul.f32 %v487, 0.2
        %v1000 = vmul.f32 %v488, 0.2
        %v1001 = vmul.f32 %v489, 0.2
        %v1002 = vmul.f32 %v490, 0.2
        %v1003 = vmul.f32 %v491, 0.2
        %v1004 = vmul.f32 %v492, 0.2
        %v1005 = vmul.f32 %v493, 0.2
        %v1006 = vmul.f32 %v494, 0.2
        %v1007 = vmul.f32 %v495, 0.2
        %v1008 = vmul.f32 %v496, 0.2
        %v1009 = vmul.f32 %v497, 0.2
        %v1010 = vmul.f32 %v498, 0.2
        %v1011 = vmul.f32 %v499, 0.2
        %v1012 = vmul.f32 %v500, 0.2
        %v1013 = vmul.f32 %v501, 0.2
        %v1014 = vmul.f32 %v502, 0.2
        %v1015 = vmul.f32 %v503, 0.2
        %v1016 = vmul.f32 %v504, 0.2
        %v1017 = vmul.f32 %v505, 0.2
        %v1018 = vmul.f32 %v506, 0.2
        %v1019 = vmul.f32 %v507, 0.2
        %v1020 = vmul.f32 %v508, 0.2
        %v1021 = vmul.f32 %v509, 0.2
        %v1022 = vmul.f32 %v510, 0.2
        %v1023 = vmul.f32 %v511, 0.2
        %v1024 = vmul.f32 %v512, 0.2
        %v1025 = vmul.f32 %v513, 0.2
        %v1026 = vmul.f32 %v514, 0.2
        %v1027 = vmul.f32 %v515, 0.2
        %v1028 = vmul.f32 %v516, 0.2
        %v1029 = vmul.f32 %v517, 0.2
        %v1030 = vmul.f32 %v518, 0.2
        %v1031 = vmul.f32 %v519, 0.2
        %v1032 = vmul.f32 %v520, 0.2
        %v1033 = vmul.f32 %v521, 0.2
        %v1034 = vmul.f32 %v522, 0.2
        %v1035 = vmul.f32 %v523, 0.2
        %v1036 = vmul.f32 %v524, 0.2
        %v1037 = vmul.f32 %v525, 0.2
        %v1038 = vmul.f32 %v526, 0.2
        %v1039 = vmul.f32 %v527, 0.2
        %v1040 = vmul.f32 %v528, 0.2
        %v1041 = vmul.f32 %v529, 0.2
        %v1042 = vmul.f32 %v530, 0.2
        %v1043 = vmul.f32 %v531, 0.2
        %v1044 = vmul.f32 %v532, 0.2
        %v1045 = vmul.f32 %v533, 0.2
        %v1046 = vmul.f32 %v534, 0.2
        %v1047 = vmul.f32 %v535, 0.2
        %v1048 = vmul.f32 %v536, 0.2
        %v1049 = vmul.f32 %v537, 0.2
        %v1050 = vmul.f32 %v538, 0.2
        %v1051 = vmul.f32 %v539, 0.2
        %v1052 = vmul.f32 %v540, 0.2
        %v1053 = vmul.f32 %v541, 0.2
        %v1054 = vmul.f32 %v542, 0.2
        %v1055 = vmul.f32 %v543, 0.2
        %v1056 = vmul.f32 %v544, 0.2
        %v1057 = vmul.f32 %v545, 0.2
        %v1058 = vmul.f32 %v546, 0.2
        %v1059 = vmul.f32 %v547, 0.2
        %v1060 = vmul.f32 %v548, 0.2
        %v1061 = vmul.f32 %v549, 0.2
        %v1062 = vmul.f32 %v550, 0.2
        %v1063 = vmul.f32 %v551, 0.2
        %v1064 = vmul.f32 %v552, 0.2
        %v1065 = vmul.f32 %v553, 0.2
        %v1066 = vmul.f32 %v554, 0.2
        %v1067 = vmul.f32 %v555, 0.2
        %v1068 = vmul.f32 %v556, 0.2
        %v1069 = vmul.f32 %v557, 0.2
        %v1070 = vmul.f32 %v558, 0.2
        %v1071 = vmul.f32 %v559, 0.2
        %v1072 = vmul.f32 %v560, 0.2
        %v1073 = vmul.f32 %v561, 0.2
        %v1074 = vmul.f32 %v562, 0.2
        %v1075 = vmul.f32 %v563, 0.2
        %v1076 = vmul.f32 %v564, 0.2
        %v1077 = vmul.f32 %v565, 0.2
        %v1078 = vmul.f32 %v566, 0.2
        %v1079 = vmul.f32 %v567, 0.2
        %v1080 = vmul.f32 %v568, 0.2
        %v1081 = vmul.f32 %v569, 0.2
        %v1082 = vmul.f32 %v570, 0.2
        %v1083 = vmul.f32 %v571, 0.2
        %v1084 = vmul.f32 %v572, 0.2
        %v1085 = vmul.f32 %v573, 0.2
        %v1086 = vmul.f32 %v574, 0.2
        %v1087 = vmul.f32 %v575, 0.2
        %v1088 = vmul.f32 %v576, 0.2
        %v1089 = vmul.f32 %v577, 0.2
        %v1090 = vmul.f32 %v578, 0.2
        %v1091 = vmul.f32 %v579, 0.2
        %v1092 = vmul.f32 %v580, 0.2
        %v1093 = vmul.f32 %v581, 0.2
        %v1094 = vmul.f32 %v582, 0.2
        %v1095 = vmul.f32 %v583, 0.2
        %v1096 = vmul.f32 %v584, 0.2
        %v1097 = vmul.f32 %v585, 0.2
        %v1098 = vmul.f32 %v586, 0.2
        %v1099 = vmul.f32 %v587, 0.2
        %v1100 = vmul.f32 %v588, 0.2
        %v1101 = vmul.f32 %v589, 0.2
        %v1102 = vmul.f32 %v590, 0.2
        %v1103 = vmul.f32 %v591, 0.2
        %v1104 = vmul.f32 %v592, 0.2
        %v1105 = vmul.f32 %v593, 0.2
        %v1106 = vmul.f32 %v594, 0.2
        %v1107 = vmul.f32 %v595, 0.2
        %v1108 = vmul.f32 %v596, 0.2
        %v1109 = vmul.f32 %v597, 0.2
        %v1110 = vmul.f32 %v598, 0.2
        %v1111 = vmul.f32 %v599, 0.2
        %v1112 = vmul.f32 %v600, 0.2
        %v1113 = vmul.f32 %v601, 0.2
        %v1114 = vmul.f32 %v602, 0.2
        %v1115 = vmul.f32 %v603, 0.2
        %v1116 = vmul.f32 %v604, 0.2
        %v1117 = vmul.f32 %v605, 0.2
        %v1118 = vmul.f32 %v606, 0.2
        %v1119 = vmul.f32 %v607, 0.2
        %v1120 = vmul.f32 %v608, 0.2
        %v1121 = vmul.f32 %v609, 0.2
        %v1122 = vmul.f32 %v610, 0.2
        %v1123 = vmul.f32 %v611, 0.2
        %v1124 = vmul.f32 %v612, 0.2
        %v1125 = vmul.f32 %v613, 0.2
        %v1126 = vmul.f32 %v614, 0.2
        %v1127 = vmul.f32 %v615, 0.2
        %v1128 = vmul.f32 %v616, 0.2
        %v1129 = vmul.f32 %v617, 0.2
        %v1130 = vmul.f32 %v618, 0.2
        %v1131 = vmul.f32 %v619, 0.2
        %v1132 = vmul.f32 %v620, 0.2
        %v1133 = vmul.f32 %v621, 0.2
        %v1134 = vmul.f32 %v622, 0.2
        %v1135 = vmul.f32 %v623, 0.2
        %v1136 = vmul.f32 %v624, 0.2
        %v1137 = vmul.f32 %v625, 0.2
        %v1138 = vmul.f32 %v626, 0.2
        %v1139 = vmul.f32 %v627, 0.2
        %v1140 = vmul.f32 %v628, 0.2
        %v1141 = vmul.f32 %v629, 0.2
        %v1142 = vmul.f32 %v630, 0.2
        %v1143 = vmul.f32 %v631, 0.2
        %v1144 = vmul.f32 %v632, 0.2
        %v1145 = vmul.f32 %v633, 0.2
        %v1146 = vmul.f32 %v634, 0.2
        %v1147 = vmul.f32 %v635, 0.2
        %v1148 = vmul.f32 %v636, 0.2
        %v1149 = vmul.f32 %v637, 0.2
        %v1150 = vmul.f32 %v638, 0.2
        %v1151 = vmul.f32 %v639, 0.2
        %v1152 = vmul.f32 %v640, 0.2
        %v1153 = vmul.f32 %v641, 0.2
        %v1154 = vmul.f32 %v642, 0.2
        %v1155 = vmul.f32 %v643, 0.2
        %v1156 = vmul.f32 %v644, 0.2
        %v1157 = vmul.f32 %v645, 0.2
        %v1158 = vmul.f32 %v646, 0.2
        %v1159 = vmul.f32 %v647, 0.2
        %v1160 = vmul.f32 %v648, 0.2
        %v1161 = vmul.f32 %v649, 0.2
        %v1162 = vmax.f32 %v650, %v138
        %v1163 = vmax.f32 %v651, %v139
        %v1164 = vmax.f32 %v652, %v140
        %v1165 = vmax.f32 %v653, %v141
        %v1166 = vmax.f32 %v654, %v142
        %v1167 = vmax.f32 %v655, %v143
        %v1168 = vmax.f32 %v656, %v144
        %v1169 = vmax.f32 %v657, %v145
        %v1170 = vmax.f32 %v658, %v146
        %v1171 = vmax.f32 %v659, %v147
        %v1172 = vmax.f32 %v660, %v148
        %v1173 = vmax.f32 %v661, %v149
        %v1174 = vmax.f32 %v662, %v150
        %v1175 = vmax.f32 %v663, %v151
        %v1176 = vmax.f32 %v664, %v152
        %v1177 = vmax.f32 %v665, %v153
        %v1178 = vmax.f32 %v666, %v154
        %v1179 = vmax.f32 %v667, %v155
        %v1180 = vmax.f32 %v668, %v156
        %v1181 = vmax.f32 %v669, %v157
        %v1182 = vmax.f32 %v670, %v158
        %v1183 = vmax.f32 %v671, %v159
        %v1184 = vmax.f32 %v672, %v160
        %v1185 = vmax.f32 %v673, %v161
        %v1186 = vmax.f32 %v674, %v162
        %v1187 = vmax.f32 %v675, %v163
        %v1188 = vmax.f32 %v676, %v164
        %v1189 = vmax.f32 %v677, %v165
        %v1190 = vmax.f32 %v678, %v166
        %v1191 = vmax.f32 %v679, %v167
        %v1192 = vmax.f32 %v680, %v168
        %v1193 = vmax.f32 %v681, %v169
        %v1194 = vmax.f32 %v682, %v170
        %v1195 = vmax.f32 %v683, %v171
        %v1196 = vmax.f32 %v684, %v172
        %v1197 = vmax.f32 %v685, %v173
        %v1198 = vmax.f32 %v686, %v174
        %v1199 = vmax.f32 %v687, %v175
        %v1200 = vmax.f32 %v688, %v176
        %v1201 = vmax.f32 %v689, %v177
        %v1202 = vmax.f32 %v690, %v178
        %v1203 = vmax.f32 %v691, %v179
        %v1204 = vmax.f32 %v692, %v180
        %v1205 = vmax.f32 %v693, %v181
        %v1206 = vmax.f32 %v694, %v182
        %v1207 = vmax.f32 %v695, %v183
        %v1208 = vmax.f32 %v696, %v184
        %v1209 = vmax.f32 %v697, %v185
        %v1210 = vmax.f32 %v698, %v186
        %v1211 = vmax.f32 %v699, %v187
        %v1212 = vmax.f32 %v700, %v188
        %v1213 = vmax.f32 %v701, %v189
        %v1214 = vmax.f32 %v702, %v190
        %v1215 = vmax.f32 %v703, %v191
        %v1216 = vmax.f32 %v704, %v192
        %v1217 = vmax.f32 %v705, %v193
        %v1218 = vmax.f32 %v706, %v194
        %v1219 = vmax.f32 %v707, %v195
        %v1220 = vmax.f32 %v708, %v196
        %v1221 = vmax.f32 %v709, %v197
        %v1222 = vmax.f32 %v710, %v198
        %v1223 = vmax.f32 %v711, %v199
        %v1224 = vmax.f32 %v712, %v200
        %v1225 = vmax.f32 %v713, %v201
        %v1226 = vmax.f32 %v714, %v202
        %v1227 = vmax.f32 %v715, %v203
        %v1228 = vmax.f32 %v716, %v204
        %v1229 = vmax.f32 %v717, %v205
        %v1230 = vmax.f32 %v718, %v206
        %v1231 = vmax.f32 %v719, %v207
        %v1232 = vmax.f32 %v720, %v208
        %v1233 = vmax.f32 %v721, %v209
        %v1234 = vmax.f32 %v722, %v210
        %v1235 = vmax.f32 %v723, %v211
        %v1236 = vmax.f32 %v724, %v212
        %v1237 = vmax.f32 %v725, %v213
        %v1238 = vmax.f32 %v726, %v214
        %v1239 = vmax.f32 %v727, %v215
        %v1240 = vmax.f32 %v728, %v216
        %v1241 = vmax.f32 %v729, %v217
        %v1242 = vmax.f32 %v730, %v218
        %v1243 = vmax.f32 %v731, %v219
        %v1244 = vmax.f32 %v732, %v220
        %v1245 = vmax.f32 %v733, %v221
        %v1246 = vmax.f32 %v734, %v222
        %v1247 = vmax.f32 %v735, %v223
        %v1248 = vmax.f32 %v736, %v224
        %v1249 = vmax.f32 %v737, %v225
        %v1250 = vmax.f32 %v738, %v226
        %v1251 = vmax.f32 %v739, %v227
        %v1252 = vmax.f32 %v740, %v228
        %v1253 = vmax.f32 %v741, %v229
        %v1254 = vmax.f32 %v742, %v230
        %v1255 = vmax.f32 %v743, %v231
        %v1256 = vmax.f32 %v744, %v232
        %v1257 = vmax.f32 %v745, %v233
        %v1258 = vmax.f32 %v746, %v234
        %v1259 = vmax.f32 %v747, %v235
        %v1260 = vmax.f32 %v748, %v236
        %v1261 = vmax.f32 %v749, %v237
        %v1262 = vmax.f32 %v750, %v238
        %v1263 = vmax.f32 %v751, %v239
        %v1264 = vmax.f32 %v752, %v240
        %v1265 = vmax.f32 %v753, %v241
        %v1266 = vmax.f32 %v754, %v242
        %v1267 = vmax.f32 %v755, %v243
        %v1268 = vmax.f32 %v756, %v244
        %v1269 = vmax.f32 %v757, %v245
        %v1270 = vmax.f32 %v758, %v246
        %v1271 = vmax.f32 %v759, %v247
        %v1272 = vmax.f32 %v760, %v248
        %v1273 = vmax.f32 %v761, %v249
        %v1274 = vmax.f32 %v762, %v250
        %v1275 = vmax.f32 %v763, %v251
        %v1276 = vmax.f32 %v764, %v252
        %v1277 = vmax.f32 %v765, %v253
        %v1278 = vmax.f32 %v766, %v254
        %v1279 = vmax.f32 %v767, %v255
        %v1280 = vmax.f32 %v768, %v256
        %v1281 = vmax.f32 %v769, %v257
        %v1282 = vmax.f32 %v770, %v258
        %v1283 = vmax.f32 %v771, %v259
        %v1284 = vmax.f32 %v772, %v260
        %v1285 = vmax.f32 %v773, %v261
        %v1286 = vmax.f32 %v774, %v262
        %v1287 = vmax.f32 %v775, %v263
        %v1288 = vmax.f32 %v776, %v264
        %v1289 = vmax.f32 %v777, %v265
        %v1290 = vmax.f32 %v778, %v266
        %v1291 = vmax.f32 %v779, %v267
        %v1292 = vmax.f32 %v780, %v268
        %v1293 = vmax.f32 %v781, %v269
        %v1294 = vmax.f32 %v782, %v270
        %v1295 = vmax.f32 %v783, %v271
        %v1296 = vmax.f32 %v784, %v272
        %v1297 = vmax.f32 %v785, %v273
        %v1298 = vmax.f32 %v786, %v274
        %v1299 = vmax.f32 %v787, %v275
        %v1300 = vmax.f32 %v788, %v276
        %v1301 = vmax.f32 %v789, %v277
        %v1302 = vmax.f32 %v790, %v278
        %v1303 = vmax.f32 %v791, %v279
        %v1304 = vmax.f32 %v792, %v280
        %v1305 = vmax.f32 %v793, %v281
        %v1306 = vmax.f32 %v794, %v282
        %v1307 = vmax.f32 %v795, %v283
        %v1308 = vmax.f32 %v796, %v284
        %v1309 = vmax.f32 %v797, %v285
        %v1310 = vmax.f32 %v798, %v286
        %v1311 = vmax.f32 %v799, %v287
        %v1312 = vmax.f32 %v800, %v288
        %v1313 = vmax.f32 %v801, %v289
        %v1314 = vmax.f32 %v802, %v290
        %v1315 = vmax.f32 %v803, %v291
        %v1316 = vmax.f32 %v804, %v292
        %v1317 = vmax.f32 %v805, %v293
        %v1318 = vmax.f32 %v806, %v294
        %v1319 = vmax.f32 %v807, %v295
        %v1320 = vmax.f32 %v808, %v296
        %v1321 = vmax.f32 %v809, %v297
        %v1322 = vmax.f32 %v810, %v298
        %v1323 = vmax.f32 %v811, %v299
        %v1324 = vmax.f32 %v812, %v300
        %v1325 = vmax.f32 %v813, %v301
        %v1326 = vmax.f32 %v814, %v302
        %v1327 = vmax.f32 %v815, %v303
        %v1328 = vmax.f32 %v816, %v304
        %v1329 = vmax.f32 %v817, %v305
        %v1330 = vmax.f32 %v818, %v306
        %v1331 = vmax.f32 %v819, %v307
        %v1332 = vmax.f32 %v820, %v308
        %v1333 = vmax.f32 %v821, %v309
        %v1334 = vmax.f32 %v822, %v310
        %v1335 = vmax.f32 %v823, %v311
        %v1336 = vmax.f32 %v824, %v312
        %v1337 = vmax.f32 %v825, %v313
        %v1338 = vmax.f32 %v826, %v314
        %v1339 = vmax.f32 %v827, %v315
        %v1340 = vmax.f32 %v828, %v316
        %v1341 = vmax.f32 %v829, %v317
        %v1342 = vmax.f32 %v830, %v318
        %v1343 = vmax.f32 %v831, %v319
        %v1344 = vmax.f32 %v832, %v320
        %v1345 = vmax.f32 %v833, %v321
        %v1346 = vmax.f32 %v834, %v322
        %v1347 = vmax.f32 %v835, %v323
        %v1348 = vmax.f32 %v836, %v324
        %v1349 = vmax.f32 %v837, %v325
        %v1350 = vmax.f32 %v838, %v326
        %v1351 = vmax.f32 %v839, %v327
        %v1352 = vmax.f32 %v840, %v328
        %v1353 = vmax.f32 %v841, %v329
        %v1354 = vmax.f32 %v842, %v330
        %v1355 = vmax.f32 %v843, %v331
        %v1356 = vmax.f32 %v844, %v332
        %v1357 = vmax.f32 %v845, %v333
        %v1358 = vmax.f32 %v846, %v334
        %v1359 = vmax.f32 %v847, %v335
        %v1360 = vmax.f32 %v848, %v336
        %v1361 = vmax.f32 %v849, %v337
        %v1362 = vmax.f32 %v850, %v338
        %v1363 = vmax.f32 %v851, %v339
        %v1364 = vmax.f32 %v852, %v340
        %v1365 = vmax.f32 %v853, %v341
        %v1366 = vmax.f32 %v854, %v342
        %v1367 = vmax.f32 %v855, %v343
        %v1368 = vmax.f32 %v856, %v344
        %v1369 = vmax.f32 %v857, %v345
        %v1370 = vmax.f32 %v858, %v346
        %v1371 = vmax.f32 %v859, %v347
        %v1372 = vmax.f32 %v860, %v348
        %v1373 = vmax.f32 %v861, %v349
        %v1374 = vmax.f32 %v862, %v350
        %v1375 = vmax.f32 %v863, %v351
        %v1376 = vmax.f32 %v864, %v352
        %v1377 = vmax.f32 %v865, %v353
        %v1378 = vmax.f32 %v866, %v354
        %v1379 = vmax.f32 %v867, %v355
        %v1380 = vmax.f32 %v868, %v356
        %v1381 = vmax.f32 %v869, %v357
        %v1382 = vmax.f32 %v870, %v358
        %v1383 = vmax.f32 %v871, %v359
        %v1384 = vmax.f32 %v872, %v360
        %v1385 = vmax.f32 %v873, %v361
        %v1386 = vmax.f32 %v874, %v362
        %v1387 = vmax.f32 %v875, %v363
        %v1388 = vmax.f32 %v876, %v364
        %v1389 = vmax.f32 %v877, %v365
        %v1390 = vmax.f32 %v878, %v366
        %v1391 = vmax.f32 %v879, %v367
        %v1392 = vmax.f32 %v880, %v368
        %v1393 = vmax.f32 %v881, %v369
        %v1394 = vmax.f32 %v882, %v370
        %v1395 = vmax.f32 %v883, %v371
        %v1396 = vmax.f32 %v884, %v372
        %v1397 = vmax.f32 %v885, %v373
        %v1398 = vmax.f32 %v886, %v374
        %v1399 = vmax.f32 %v887, %v375
        %v1400 = vmax.f32 %v888, %v376
        %v1401 = vmax.f32 %v889, %v377
        %v1402 = vmax.f32 %v890, %v378
        %v1403 = vmax.f32 %v891, %v379
        %v1404 = vmax.f32 %v892, %v380
        %v1405 = vmax.f32 %v893, %v381
        %v1406 = vmax.f32 %v894, %v382
        %v1407 = vmax.f32 %v895, %v383
        %v1408 = vmax.f32 %v896, %v384
        %v1409 = vmax.f32 %v897, %v385
        %v1410 = vmax.f32 %v898, %v386
        %v1411 = vmax.f32 %v899, %v387
        %v1412 = vmax.f32 %v900, %v388
        %v1413 = vmax.f32 %v901, %v389
        %v1414 = vmax.f32 %v902, %v390
        %v1415 = vmax.f32 %v903, %v391
        %v1416 = vmax.f32 %v904, %v392
        %v1417 = vmax.f32 %v905, %v393
        %v1418 = vmax.f32 %v906, %v394
        %v1419 = vmax.f32 %v907, %v395
        %v1420 = vmax.f32 %v908, %v396
        %v1421 = vmax.f32 %v909, %v397
        %v1422 = vmax.f32 %v910, %v398
        %v1423 = vmax.f32 %v911, %v399
        %v1424 = vmax.f32 %v912, %v400
        %v1425 = vmax.f32 %v913, %v401
        %v1426 = vmax.f32 %v914, %v402
        %v1427 = vmax.f32 %v915, %v403
        %v1428 = vmax.f32 %v916, %v404
        %v1429 = vmax.f32 %v917, %v405
        %v1430 = vmax.f32 %v918, %v406
        %v1431 = vmax.f32 %v919, %v407
        %v1432 = vmax.f32 %v920, %v408
        %v1433 = vmax.f32 %v921, %v409
        %v1434 = vmax.f32 %v922, %v410
        %v1435 = vmax.f32 %v923, %v411
        %v1436 = vmax.f32 %v924, %v412
        %v1437 = vmax.f32 %v925, %v413
        %v1438 = vmax.f32 %v926, %v414
        %v1439 = vmax.f32 %v927, %v415
        %v1440 = vmax.f32 %v928, %v416
        %v1441 = vmax.f32 %v929, %v417
        %v1442 = vmax.f32 %v930, %v418
        %v1443 = vmax.f32 %v931, %v419
        %v1444 = vmax.f32 %v932, %v420
        %v1445 = vmax.f32 %v933, %v421
        %v1446 = vmax.f32 %v934, %v422
        %v1447 = vmax.f32 %v935, %v423
        %v1448 = vmax.f32 %v936, %v424
        %v1449 = vmax.f32 %v937, %v425
        %v1450 = vmax.f32 %v938, %v426
        %v1451 = vmax.f32 %v939, %v427
        %v1452 = vmax.f32 %v940, %v428
        %v1453 = vmax.f32 %v941, %v429
        %v1454 = vmax.f32 %v942, %v430
        %v1455 = vmax.f32 %v943, %v431
        %v1456 = vmax.f32 %v944, %v432
        %v1457 = vmax.f32 %v945, %v433
        %v1458 = vmax.f32 %v946, %v434
        %v1459 = vmax.f32 %v947, %v435
        %v1460 = vmax.f32 %v948, %v436
        %v1461 = vmax.f32 %v949, %v437
        %v1462 = vmax.f32 %v950, %v438
        %v1463 = vmax.f32 %v951, %v439
        %v1464 = vmax.f32 %v952, %v440
        %v1465 = vmax.f32 %v953, %v441
        %v1466 = vmax.f32 %v954, %v442
        %v1467 = vmax.f32 %v955, %v443
        %v1468 = vmax.f32 %v956, %v444
        %v1469 = vmax.f32 %v957, %v445
        %v1470 = vmax.f32 %v958, %v446
        %v1471 = vmax.f32 %v959, %v447
        %v1472 = vmax.f32 %v960, %v448
        %v1473 = vmax.f32 %v961, %v449
        %v1474 = vmax.f32 %v962, %v450
        %v1475 = vmax.f32 %v963, %v451
        %v1476 = vmax.f32 %v964, %v452
        %v1477 = vmax.f32 %v965, %v453
        %v1478 = vmax.f32 %v966, %v454
        %v1479 = vmax.f32 %v967, %v455
        %v1480 = vmax.f32 %v968, %v456
        %v1481 = vmax.f32 %v969, %v457
        %v1482 = vmax.f32 %v970, %v458
        %v1483 = vmax.f32 %v971, %v459
        %v1484 = vmax.f32 %v972, %v460
        %v1485 = vmax.f32 %v973, %v461
        %v1486 = vmax.f32 %v974, %v462
        %v1487 = vmax.f32 %v975, %v463
        %v1488 = vmax.f32 %v976, %v464
        %v1489 = vmax.f32 %v977, %v465
        %v1490 = vmax.f32 %v978, %v466
        %v1491 = vmax.f32 %v979, %v467
        %v1492 = vmax.f32 %v980, %v468
        %v1493 = vmax.f32 %v981, %v469
        %v1494 = vmax.f32 %v982, %v470
        %v1495 = vmax.f32 %v983, %v471
        %v1496 = vmax.f32 %v984, %v472
        %v1497 = vmax.f32 %v985, %v473
        %v1498 = vmax.f32 %v986, %v474
        %v1499 = vmax.f32 %v987, %v475
        %v1500 = vmax.f32 %v988, %v476
        %v1501 = vmax.f32 %v989, %v477
        %v1502 = vmax.f32 %v990, %v478
        %v1503 = vmax.f32 %v991, %v479
        %v1504 = vmax.f32 %v992, %v480
        %v1505 = vmax.f32 %v993, %v481
        %v1506 = vmax.f32 %v994, %v482
        %v1507 = vmax.f32 %v995, %v483
        %v1508 = vmax.f32 %v996, %v484
        %v1509 = vmax.f32 %v997, %v485
        %v1510 = vmax.f32 %v998, %v486
        %v1511 = vmax.f32 %v999, %v487
        %v1512 = vmax.f32 %v1000, %v488
        %v1513 = vmax.f32 %v1001, %v489
        %v1514 = vmax.f32 %v1002, %v490
        %v1515 = vmax.f32 %v1003, %v491
        %v1516 = vmax.f32 %v1004, %v492
        %v1517 = vmax.f32 %v1005, %v493
        %v1518 = vmax.f32 %v1006, %v494
        %v1519 = vmax.f32 %v1007, %v495
        %v1520 = vmax.f32 %v1008, %v496
        %v1521 = vmax.f32 %v1009, %v497
        %v1522 = vmax.f32 %v1010, %v498
        %v1523 = vmax.f32 %v1011, %v499
        %v1524 = vmax.f32 %v1012, %v500
        %v1525 = vmax.f32 %v1013, %v501
        %v1526 = vmax.f32 %v1014, %v502
        %v1527 = vmax.f32 %v1015, %v503
        %v1528 = vmax.f32 %v1016, %v504
        %v1529 = vmax.f32 %v1017, %v505
        %v1530 = vmax.f32 %v1018, %v506
        %v1531 = vmax.f32 %v1019, %v507
        %v1532 = vmax.f32 %v1020, %v508
        %v1533 = vmax.f32 %v1021, %v509
        %v1534 = vmax.f32 %v1022, %v510
        %v1535 = vmax.f32 %v1023, %v511
        %v1536 = vmax.f32 %v1024, %v512
        %v1537 = vmax.f32 %v1025, %v513
        %v1538 = vmax.f32 %v1026, %v514
        %v1539 = vmax.f32 %v1027, %v515
        %v1540 = vmax.f32 %v1028, %v516
        %v1541 = vmax.f32 %v1029, %v517
        %v1542 = vmax.f32 %v1030, %v518
        %v1543 = vmax.f32 %v1031, %v519
        %v1544 = vmax.f32 %v1032, %v520
        %v1545 = vmax.f32 %v1033, %v521
        %v1546 = vmax.f32 %v1034, %v522
        %v1547 = vmax.f32 %v1035, %v523
        %v1548 = vmax.f32 %v1036, %v524
        %v1549 = vmax.f32 %v1037, %v525
        %v1550 = vmax.f32 %v1038, %v526
        %v1551 = vmax.f32 %v1039, %v527
        %v1552 = vmax.f32 %v1040, %v528
        %v1553 = vmax.f32 %v1041, %v529
        %v1554 = vmax.f32 %v1042, %v530
        %v1555 = vmax.f32 %v1043, %v531
        %v1556 = vmax.f32 %v1044, %v532
        %v1557 = vmax.f32 %v1045, %v533
        %v1558 = vmax.f32 %v1046, %v534
        %v1559 = vmax.f32 %v1047, %v535
        %v1560 = vmax.f32 %v1048, %v536
        %v1561 = vmax.f32 %v1049, %v537
        %v1562 = vmax.f32 %v1050, %v538
        %v1563 = vmax.f32 %v1051, %v539
        %v1564 = vmax.f32 %v1052, %v540
        %v1565 = vmax.f32 %v1053, %v541
        %v1566 = vmax.f32 %v1054, %v542
        %v1567 = vmax.f32 %v1055, %v543
        %v1568 = vmax.f32 %v1056, %v544
        %v1569 = vmax.f32 %v1057, %v545
        %v1570 = vmax.f32 %v1058, %v546
        %v1571 = vmax.f32 %v1059, %v547
        %v1572 = vmax.f32 %v1060, %v548
        %v1573 = vmax.f32 %v1061, %v549
        %v1574 = vmax.f32 %v1062, %v550
        %v1575 = vmax.f32 %v1063, %v551
        %v1576 = vmax.f32 %v1064, %v552
        %v1577 = vmax.f32 %v1065, %v553
        %v1578 = vmax.f32 %v1066, %v554
        %v1579 = vmax.f32 %v1067, %v555
        %v1580 = vmax.f32 %v1068, %v556
        %v1581 = vmax.f32 %v1069, %v557
        %v1582 = vmax.f32 %v1070, %v558
        %v1583 = vmax.f32 %v1071, %v559
        %v1584 = vmax.f32 %v1072, %v560
        %v1585 = vmax.f32 %v1073, %v561
        %v1586 = vmax.f32 %v1074, %v562
        %v1587 = vmax.f32 %v1075, %v563
        %v1588 = vmax.f32 %v1076, %v564
        %v1589 = vmax.f32 %v1077, %v565
        %v1590 = vmax.f32 %v1078, %v566
        %v1591 = vmax.f32 %v1079, %v567
        %v1592 = vmax.f32 %v1080, %v568
        %v1593 = vmax.f32 %v1081, %v569
        %v1594 = vmax.f32 %v1082, %v570
        %v1595 = vmax.f32 %v1083, %v571
        %v1596 = vmax.f32 %v1084, %v572
        %v1597 = vmax.f32 %v1085, %v573
        %v1598 = vmax.f32 %v1086, %v574
        %v1599 = vmax.f32 %v1087, %v575
        %v1600 = vmax.f32 %v1088, %v576
        %v1601 = vmax.f32 %v1089, %v577
        %v1602 = vmax.f32 %v1090, %v578
        %v1603 = vmax.f32 %v1091, %v579
        %v1604 = vmax.f32 %v1092, %v580
        %v1605 = vmax.f32 %v1093, %v581
        %v1606 = vmax.f32 %v1094, %v582
        %v1607 = vmax.f32 %v1095, %v583
        %v1608 = vmax.f32 %v1096, %v584
        %v1609 = vmax.f32 %v1097, %v585
        %v1610 = vmax.f32 %v1098, %v586
        %v1611 = vmax.f32 %v1099, %v587
        %v1612 = vmax.f32 %v1100, %v588
        %v1613 = vmax.f32 %v1101, %v589
        %v1614 = vmax.f32 %v1102, %v590
        %v1615 = vmax.f32 %v1103, %v591
        %v1616 = vmax.f32 %v1104, %v592
        %v1617 = vmax.f32 %v1105, %v593
        %v1618 = vmax.f32 %v1106, %v594
        %v1619 = vmax.f32 %v1107, %v595
        %v1620 = vmax.f32 %v1108, %v596
        %v1621 = vmax.f32 %v1109, %v597
        %v1622 = vmax.f32 %v1110, %v598
        %v1623 = vmax.f32 %v1111, %v599
        %v1624 = vmax.f32 %v1112, %v600
        %v1625 = vmax.f32 %v1113, %v601
        %v1626 = vmax.f32 %v1114, %v602
        %v1627 = vmax.f32 %v1115, %v603
        %v1628 = vmax.f32 %v1116, %v604
        %v1629 = vmax.f32 %v1117, %v605
        %v1630 = vmax.f32 %v1118, %v606
        %v1631 = vmax.f32 %v1119, %v607
        %v1632 = vmax.f32 %v1120, %v608
        %v1633 = vmax.f32 %v1121, %v609
        %v1634 = vmax.f32 %v1122, %v610
        %v1635 = vmax.f32 %v1123, %v611
        %v1636 = vmax.f32 %v1124, %v612
        %v1637 = vmax.f32 %v1125, %v613
        %v1638 = vmax.f32 %v1126, %v614
        %v1639 = vmax.f32 %v1127, %v615
        %v1640 = vmax.f32 %v1128, %v616
        %v1641 = vmax.f32 %v1129, %v617
        %v1642 = vmax.f32 %v1130, %v618
        %v1643 = vmax.f32 %v1131, %v619
        %v1644 = vmax.f32 %v1132, %v620
        %v1645 = vmax.f32 %v1133, %v621
        %v1646 = vmax.f32 %v1134, %v622
        %v1647 = vmax.f32 %v1135, %v623
        %v1648 = vmax.f32 %v1136, %v624
        %v1649 = vmax.f32 %v1137, %v625
        %v1650 = vmax.f32 %v1138, %v626
        %v1651 = vmax.f32 %v1139, %v627
        %v1652 = vmax.f32 %v1140, %v628
        %v1653 = vmax.f32 %v1141, %v629
        %v1654 = vmax.f32 %v1142, %v630
        %v1655 = vmax.f32 %v1143, %v631
        %v1656 = vmax.f32 %v1144, %v632
        %v1657 = vmax.f32 %v1145, %v633
        %v1658 = vmax.f32 %v1146, %v634
        %v1659 = vmax.f32 %v1147, %v635
        %v1660 = vmax.f32 %v1148, %v636
        %v1661 = vmax.f32 %v1149, %v637
        %v1662 = vmax.f32 %v1150, %v638
        %v1663 = vmax.f32 %v1151, %v639
        %v1664 = vmax.f32 %v1152, %v640
        %v1665 = vmax.f32 %v1153, %v641
        %v1666 = vmax.f32 %v1154, %v642
        %v1667 = vmax.f32 %v1155, %v643
        %v1668 = vmax.f32 %v1156, %v644
        %v1669 = vmax.f32 %v1157, %v645
        %v1670 = vmax.f32 %v1158, %v646
        %v1671 = vmax.f32 %v1159, %v647
        %v1672 = vmax.f32 %v1160, %v648
        %v1673 = vmax.f32 %v1161, %v649
        %1674 = vst [vmem:[%s135] sm:$0xff] %v1162
        %1675 = vst [vmem:[%s135 + $0x8] sm:$0xff] %v1163
        %1676 = vst [vmem:[%s135 + $0x10] sm:$0xff] %v1164
        %1677 = vst [vmem:[%s135 + $0x18] sm:$0xff] %v1165
        %1678 = vst [vmem:[%s135 + $0x20] sm:$0xff] %v1166
        %1679 = vst [vmem:[%s135 + $0x28] sm:$0xff] %v1167
        %1680 = vst [vmem:[%s135 + $0x30] sm:$0xff] %v1168
        %1681 = vst [vmem:[%s135 + $0x38] sm:$0xff] %v1169
        %1682 = vst [vmem:[%s135 + $0x40] sm:$0xff] %v1170
        %1683 = vst [vmem:[%s135 + $0x48] sm:$0xff] %v1171
        %1684 = vst [vmem:[%s135 + $0x50] sm:$0xff] %v1172
        %1685 = vst [vmem:[%s135 + $0x58] sm:$0xff] %v1173
        %1686 = vst [vmem:[%s135 + $0x60] sm:$0xff] %v1174
        %1687 = vst [vmem:[%s135 + $0x68] sm:$0xff] %v1175
        %1688 = vst [vmem:[%s135 + $0x70] sm:$0xff] %v1176
        %1689 = vst [vmem:[%s135 + $0x78] sm:$0xff] %v1177
        %1690 = vst [vmem:[%s135 + $0x80] sm:$0xff] %v1178
        %1691 = vst [vmem:[%s135 + $0x88] sm:$0xff] %v1179
        %1692 = vst [vmem:[%s135 + $0x90] sm:$0xff] %v1180
        %1693 = vst [vmem:[%s135 + $0x98] sm:$0xff] %v1181
        %1694 = vst [vmem:[%s135 + $0xa0] sm:$0xff] %v1182
        %1695 = vst [vmem:[%s135 + $0xa8] sm:$0xff] %v1183
        %1696 = vst [vmem:[%s135 + $0xb0] sm:$0xff] %v1184
        %1697 = vst [vmem:[%s135 + $0xb8] sm:$0xff] %v1185
        %1698 = vst [vmem:[%s135 + $0xc0] sm:$0xff] %v1186
        %1699 = vst [vmem:[%s135 + $0xc8] sm:$0xff] %v1187
        %1700 = vst [vmem:[%s135 + $0xd0] sm:$0xff] %v1188
        %1701 = vst [vmem:[%s135 + $0xd8] sm:$0xff] %v1189
        %1702 = vst [vmem:[%s135 + $0xe0] sm:$0xff] %v1190
        %1703 = vst [vmem:[%s135 + $0xe8] sm:$0xff] %v1191
        %1704 = vst [vmem:[%s135 + $0xf0] sm:$0xff] %v1192
        %1705 = vst [vmem:[%s135 + $0xf8] sm:$0xff] %v1193
        %1706 = vst [vmem:[%s135 + $0x100] sm:$0xff] %v1194
        %1707 = vst [vmem:[%s135 + $0x108] sm:$0xff] %v1195
        %1708 = vst [vmem:[%s135 + $0x110] sm:$0xff] %v1196
        %1709 = vst [vmem:[%s135 + $0x118] sm:$0xff] %v1197
        %1710 = vst [vmem:[%s135 + $0x120] sm:$0xff] %v1198
        %1711 = vst [vmem:[%s135 + $0x128] sm:$0xff] %v1199
        %1712 = vst [vmem:[%s135 + $0x130] sm:$0xff] %v1200
        %1713 = vst [vmem:[%s135 + $0x138] sm:$0xff] %v1201
        %1714 = vst [vmem:[%s135 + $0x140] sm:$0xff] %v1202
        %1715 = vst [vmem:[%s135 + $0x148] sm:$0xff] %v1203
        %1716 = vst [vmem:[%s135 + $0x150] sm:$0xff] %v1204
        %1717 = vst [vmem:[%s135 + $0x158] sm:$0xff] %v1205
        %1718 = vst [vmem:[%s135 + $0x160] sm:$0xff] %v1206
        %1719 = vst [vmem:[%s135 + $0x168] sm:$0xff] %v1207
        %1720 = vst [vmem:[%s135 + $0x170] sm:$0xff] %v1208
        %1721 = vst [vmem:[%s135 + $0x178] sm:$0xff] %v1209
        %1722 = vst [vmem:[%s135 + $0x180] sm:$0xff] %v1210
        %1723 = vst [vmem:[%s135 + $0x188] sm:$0xff] %v1211
        %1724 = vst [vmem:[%s135 + $0x190] sm:$0xff] %v1212
        %1725 = vst [vmem:[%s135 + $0x198] sm:$0xff] %v1213
        %1726 = vst [vmem:[%s135 + $0x1a0] sm:$0xff] %v1214
        %1727 = vst [vmem:[%s135 + $0x1a8] sm:$0xff] %v1215
        %1728 = vst [vmem:[%s135 + $0x1b0] sm:$0xff] %v1216
        %1729 = vst [vmem:[%s135 + $0x1b8] sm:$0xff] %v1217
        %1730 = vst [vmem:[%s135 + $0x1c0] sm:$0xff] %v1218
        %1731 = vst [vmem:[%s135 + $0x1c8] sm:$0xff] %v1219
        %1732 = vst [vmem:[%s135 + $0x1d0] sm:$0xff] %v1220
        %1733 = vst [vmem:[%s135 + $0x1d8] sm:$0xff] %v1221
        %1734 = vst [vmem:[%s135 + $0x1e0] sm:$0xff] %v1222
        %1735 = vst [vmem:[%s135 + $0x1e8] sm:$0xff] %v1223
        %1736 = vst [vmem:[%s135 + $0x1f0] sm:$0xff] %v1224
        %1737 = vst [vmem:[%s135 + $0x1f8] sm:$0xff] %v1225
        %1738 = vst [vmem:[%s135 + $0x200] sm:$0xff] %v1226
        %1739 = vst [vmem:[%s135 + $0x208] sm:$0xff] %v1227
        %1740 = vst [vmem:[%s135 + $0x210] sm:$0xff] %v1228
        %1741 = vst [vmem:[%s135 + $0x218] sm:$0xff] %v1229
        %1742 = vst [vmem:[%s135 + $0x220] sm:$0xff] %v1230
        %1743 = vst [vmem:[%s135 + $0x228] sm:$0xff] %v1231
        %1744 = vst [vmem:[%s135 + $0x230] sm:$0xff] %v1232
        %1745 = vst [vmem:[%s135 + $0x238] sm:$0xff] %v1233
        %1746 = vst [vmem:[%s135 + $0x240] sm:$0xff] %v1234
        %1747 = vst [vmem:[%s135 + $0x248] sm:$0xff] %v1235
        %1748 = vst [vmem:[%s135 + $0x250] sm:$0xff] %v1236
        %1749 = vst [vmem:[%s135 + $0x258] sm:$0xff] %v1237
        %1750 = vst [vmem:[%s135 + $0x260] sm:$0xff] %v1238
        %1751 = vst [vmem:[%s135 + $0x268] sm:$0xff] %v1239
        %1752 = vst [vmem:[%s135 + $0x270] sm:$0xff] %v1240
        %1753 = vst [vmem:[%s135 + $0x278] sm:$0xff] %v1241
        %1754 = vst [vmem:[%s135 + $0x280] sm:$0xff] %v1242
        %1755 = vst [vmem:[%s135 + $0x288] sm:$0xff] %v1243
        %1756 = vst [vmem:[%s135 + $0x290] sm:$0xff] %v1244
        %1757 = vst [vmem:[%s135 + $0x298] sm:$0xff] %v1245
        %1758 = vst [vmem:[%s135 + $0x2a0] sm:$0xff] %v1246
        %1759 = vst [vmem:[%s135 + $0x2a8] sm:$0xff] %v1247
        %1760 = vst [vmem:[%s135 + $0x2b0] sm:$0xff] %v1248
        %1761 = vst [vmem:[%s135 + $0x2b8] sm:$0xff] %v1249
        %1762 = vst [vmem:[%s135 + $0x2c0] sm:$0xff] %v1250
        %1763 = vst [vmem:[%s135 + $0x2c8] sm:$0xff] %v1251
        %1764 = vst [vmem:[%s135 + $0x2d0] sm:$0xff] %v1252
        %1765 = vst [vmem:[%s135 + $0x2d8] sm:$0xff] %v1253
        %1766 = vst [vmem:[%s135 + $0x2e0] sm:$0xff] %v1254
        %1767 = vst [vmem:[%s135 + $0x2e8] sm:$0xff] %v1255
        %1768 = vst [vmem:[%s135 + $0x2f0] sm:$0xff] %v1256
        %1769 = vst [vmem:[%s135 + $0x2f8] sm:$0xff] %v1257
        %1770 = vst [vmem:[%s135 + $0x300] sm:$0xff] %v1258
        %1771 = vst [vmem:[%s135 + $0x308] sm:$0xff] %v1259
        %1772 = vst [vmem:[%s135 + $0x310] sm:$0xff] %v1260
        %1773 = vst [vmem:[%s135 + $0x318] sm:$0xff] %v1261
        %1774 = vst [vmem:[%s135 + $0x320] sm:$0xff] %v1262
        %1775 = vst [vmem:[%s135 + $0x328] sm:$0xff] %v1263
        %1776 = vst [vmem:[%s135 + $0x330] sm:$0xff] %v1264
        %1777 = vst [vmem:[%s135 + $0x338] sm:$0xff] %v1265
        %1778 = vst [vmem:[%s135 + $0x340] sm:$0xff] %v1266
        %1779 = vst [vmem:[%s135 + $0x348] sm:$0xff] %v1267
        %1780 = vst [vmem:[%s135 + $0x350] sm:$0xff] %v1268
        %1781 = vst [vmem:[%s135 + $0x358] sm:$0xff] %v1269
        %1782 = vst [vmem:[%s135 + $0x360] sm:$0xff] %v1270
        %1783 = vst [vmem:[%s135 + $0x368] sm:$0xff] %v1271
        %1784 = vst [vmem:[%s135 + $0x370] sm:$0xff] %v1272
        %1785 = vst [vmem:[%s135 + $0x378] sm:$0xff] %v1273
        %1786 = vst [vmem:[%s135 + $0x380] sm:$0xff] %v1274
        %1787 = vst [vmem:[%s135 + $0x388] sm:$0xff] %v1275
        %1788 = vst [vmem:[%s135 + $0x390] sm:$0xff] %v1276
        %1789 = vst [vmem:[%s135 + $0x398] sm:$0xff] %v1277
        %1790 = vst [vmem:[%s135 + $0x3a0] sm:$0xff] %v1278
        %1791 = vst [vmem:[%s135 + $0x3a8] sm:$0xff] %v1279
        %1792 = vst [vmem:[%s135 + $0x3b0] sm:$0xff] %v1280
        %1793 = vst [vmem:[%s135 + $0x3b8] sm:$0xff] %v1281
        %1794 = vst [vmem:[%s135 + $0x3c0] sm:$0xff] %v1282
        %1795 = vst [vmem:[%s135 + $0x3c8] sm:$0xff] %v1283
        %1796 = vst [vmem:[%s135 + $0x3d0] sm:$0xff] %v1284
        %1797 = vst [vmem:[%s135 + $0x3d8] sm:$0xff] %v1285
        %1798 = vst [vmem:[%s135 + $0x3e0] sm:$0xff] %v1286
        %1799 = vst [vmem:[%s135 + $0x3e8] sm:$0xff] %v1287
        %1800 = vst [vmem:[%s135 + $0x3f0] sm:$0xff] %v1288
        %1801 = vst [vmem:[%s135 + $0x3f8] sm:$0xff] %v1289
        %1802 = vst [vmem:[%s135 + $0x400] sm:$0xff] %v1290
        %1803 = vst [vmem:[%s135 + $0x408] sm:$0xff] %v1291
        %1804 = vst [vmem:[%s135 + $0x410] sm:$0xff] %v1292
        %1805 = vst [vmem:[%s135 + $0x418] sm:$0xff] %v1293
        %1806 = vst [vmem:[%s135 + $0x420] sm:$0xff] %v1294
        %1807 = vst [vmem:[%s135 + $0x428] sm:$0xff] %v1295
        %1808 = vst [vmem:[%s135 + $0x430] sm:$0xff] %v1296
        %1809 = vst [vmem:[%s135 + $0x438] sm:$0xff] %v1297
        %1810 = vst [vmem:[%s135 + $0x440] sm:$0xff] %v1298
        %1811 = vst [vmem:[%s135 + $0x448] sm:$0xff] %v1299
        %1812 = vst [vmem:[%s135 + $0x450] sm:$0xff] %v1300
        %1813 = vst [vmem:[%s135 + $0x458] sm:$0xff] %v1301
        %1814 = vst [vmem:[%s135 + $0x460] sm:$0xff] %v1302
        %1815 = vst [vmem:[%s135 + $0x468] sm:$0xff] %v1303
        %1816 = vst [vmem:[%s135 + $0x470] sm:$0xff] %v1304
        %1817 = vst [vmem:[%s135 + $0x478] sm:$0xff] %v1305
        %1818 = vst [vmem:[%s135 + $0x480] sm:$0xff] %v1306
        %1819 = vst [vmem:[%s135 + $0x488] sm:$0xff] %v1307
        %1820 = vst [vmem:[%s135 + $0x490] sm:$0xff] %v1308
        %1821 = vst [vmem:[%s135 + $0x498] sm:$0xff] %v1309
        %1822 = vst [vmem:[%s135 + $0x4a0] sm:$0xff] %v1310
        %1823 = vst [vmem:[%s135 + $0x4a8] sm:$0xff] %v1311
        %1824 = vst [vmem:[%s135 + $0x4b0] sm:$0xff] %v1312
        %1825 = vst [vmem:[%s135 + $0x4b8] sm:$0xff] %v1313
        %1826 = vst [vmem:[%s135 + $0x4c0] sm:$0xff] %v1314
        %1827 = vst [vmem:[%s135 + $0x4c8] sm:$0xff] %v1315
        %1828 = vst [vmem:[%s135 + $0x4d0] sm:$0xff] %v1316
        %1829 = vst [vmem:[%s135 + $0x4d8] sm:$0xff] %v1317
        %1830 = vst [vmem:[%s135 + $0x4e0] sm:$0xff] %v1318
        %1831 = vst [vmem:[%s135 + $0x4e8] sm:$0xff] %v1319
        %1832 = vst [vmem:[%s135 + $0x4f0] sm:$0xff] %v1320
        %1833 = vst [vmem:[%s135 + $0x4f8] sm:$0xff] %v1321
        %1834 = vst [vmem:[%s135 + $0x500] sm:$0xff] %v1322
        %1835 = vst [vmem:[%s135 + $0x508] sm:$0xff] %v1323
        %1836 = vst [vmem:[%s135 + $0x510] sm:$0xff] %v1324
        %1837 = vst [vmem:[%s135 + $0x518] sm:$0xff] %v1325
        %1838 = vst [vmem:[%s135 + $0x520] sm:$0xff] %v1326
        %1839 = vst [vmem:[%s135 + $0x528] sm:$0xff] %v1327
        %1840 = vst [vmem:[%s135 + $0x530] sm:$0xff] %v1328
        %1841 = vst [vmem:[%s135 + $0x538] sm:$0xff] %v1329
        %1842 = vst [vmem:[%s135 + $0x540] sm:$0xff] %v1330
        %1843 = vst [vmem:[%s135 + $0x548] sm:$0xff] %v1331
        %1844 = vst [vmem:[%s135 + $0x550] sm:$0xff] %v1332
        %1845 = vst [vmem:[%s135 + $0x558] sm:$0xff] %v1333
        %1846 = vst [vmem:[%s135 + $0x560] sm:$0xff] %v1334
        %1847 = vst [vmem:[%s135 + $0x568] sm:$0xff] %v1335
        %1848 = vst [vmem:[%s135 + $0x570] sm:$0xff] %v1336
        %1849 = vst [vmem:[%s135 + $0x578] sm:$0xff] %v1337
        %1850 = vst [vmem:[%s135 + $0x580] sm:$0xff] %v1338
        %1851 = vst [vmem:[%s135 + $0x588] sm:$0xff] %v1339
        %1852 = vst [vmem:[%s135 + $0x590] sm:$0xff] %v1340
        %1853 = vst [vmem:[%s135 + $0x598] sm:$0xff] %v1341
        %1854 = vst [vmem:[%s135 + $0x5a0] sm:$0xff] %v1342
        %1855 = vst [vmem:[%s135 + $0x5a8] sm:$0xff] %v1343
        %1856 = vst [vmem:[%s135 + $0x5b0] sm:$0xff] %v1344
        %1857 = vst [vmem:[%s135 + $0x5b8] sm:$0xff] %v1345
        %1858 = vst [vmem:[%s135 + $0x5c0] sm:$0xff] %v1346
        %1859 = vst [vmem:[%s135 + $0x5c8] sm:$0xff] %v1347
        %1860 = vst [vmem:[%s135 + $0x5d0] sm:$0xff] %v1348
        %1861 = vst [vmem:[%s135 + $0x5d8] sm:$0xff] %v1349
        %1862 = vst [vmem:[%s135 + $0x5e0] sm:$0xff] %v1350
        %1863 = vst [vmem:[%s135 + $0x5e8] sm:$0xff] %v1351
        %1864 = vst [vmem:[%s135 + $0x5f0] sm:$0xff] %v1352
        %1865 = vst [vmem:[%s135 + $0x5f8] sm:$0xff] %v1353
        %1866 = vst [vmem:[%s135 + $0x600] sm:$0xff] %v1354
        %1867 = vst [vmem:[%s135 + $0x608] sm:$0xff] %v1355
        %1868 = vst [vmem:[%s135 + $0x610] sm:$0xff] %v1356
        %1869 = vst [vmem:[%s135 + $0x618] sm:$0xff] %v1357
        %1870 = vst [vmem:[%s135 + $0x620] sm:$0xff] %v1358
        %1871 = vst [vmem:[%s135 + $0x628] sm:$0xff] %v1359
        %1872 = vst [vmem:[%s135 + $0x630] sm:$0xff] %v1360
        %1873 = vst [vmem:[%s135 + $0x638] sm:$0xff] %v1361
        %1874 = vst [vmem:[%s135 + $0x640] sm:$0xff] %v1362
        %1875 = vst [vmem:[%s135 + $0x648] sm:$0xff] %v1363
        %1876 = vst [vmem:[%s135 + $0x650] sm:$0xff] %v1364
        %1877 = vst [vmem:[%s135 + $0x658] sm:$0xff] %v1365
        %1878 = vst [vmem:[%s135 + $0x660] sm:$0xff] %v1366
        %1879 = vst [vmem:[%s135 + $0x668] sm:$0xff] %v1367
        %1880 = vst [vmem:[%s135 + $0x670] sm:$0xff] %v1368
        %1881 = vst [vmem:[%s135 + $0x678] sm:$0xff] %v1369
        %1882 = vst [vmem:[%s135 + $0x680] sm:$0xff] %v1370
        %1883 = vst [vmem:[%s135 + $0x688] sm:$0xff] %v1371
        %1884 = vst [vmem:[%s135 + $0x690] sm:$0xff] %v1372
        %1885 = vst [vmem:[%s135 + $0x698] sm:$0xff] %v1373
        %1886 = vst [vmem:[%s135 + $0x6a0] sm:$0xff] %v1374
        %1887 = vst [vmem:[%s135 + $0x6a8] sm:$0xff] %v1375
        %1888 = vst [vmem:[%s135 + $0x6b0] sm:$0xff] %v1376
        %1889 = vst [vmem:[%s135 + $0x6b8] sm:$0xff] %v1377
        %1890 = vst [vmem:[%s135 + $0x6c0] sm:$0xff] %v1378
        %1891 = vst [vmem:[%s135 + $0x6c8] sm:$0xff] %v1379
        %1892 = vst [vmem:[%s135 + $0x6d0] sm:$0xff] %v1380
        %1893 = vst [vmem:[%s135 + $0x6d8] sm:$0xff] %v1381
        %1894 = vst [vmem:[%s135 + $0x6e0] sm:$0xff] %v1382
        %1895 = vst [vmem:[%s135 + $0x6e8] sm:$0xff] %v1383
        %1896 = vst [vmem:[%s135 + $0x6f0] sm:$0xff] %v1384
        %1897 = vst [vmem:[%s135 + $0x6f8] sm:$0xff] %v1385
        %1898 = vst [vmem:[%s135 + $0x700] sm:$0xff] %v1386
        %1899 = vst [vmem:[%s135 + $0x708] sm:$0xff] %v1387
        %1900 = vst [vmem:[%s135 + $0x710] sm:$0xff] %v1388
        %1901 = vst [vmem:[%s135 + $0x718] sm:$0xff] %v1389
        %1902 = vst [vmem:[%s135 + $0x720] sm:$0xff] %v1390
        %1903 = vst [vmem:[%s135 + $0x728] sm:$0xff] %v1391
        %1904 = vst [vmem:[%s135 + $0x730] sm:$0xff] %v1392
        %1905 = vst [vmem:[%s135 + $0x738] sm:$0xff] %v1393
        %1906 = vst [vmem:[%s135 + $0x740] sm:$0xff] %v1394
        %1907 = vst [vmem:[%s135 + $0x748] sm:$0xff] %v1395
        %1908 = vst [vmem:[%s135 + $0x750] sm:$0xff] %v1396
        %1909 = vst [vmem:[%s135 + $0x758] sm:$0xff] %v1397
        %1910 = vst [vmem:[%s135 + $0x760] sm:$0xff] %v1398
        %1911 = vst [vmem:[%s135 + $0x768] sm:$0xff] %v1399
        %1912 = vst [vmem:[%s135 + $0x770] sm:$0xff] %v1400
        %1913 = vst [vmem:[%s135 + $0x778] sm:$0xff] %v1401
        %1914 = vst [vmem:[%s135 + $0x780] sm:$0xff] %v1402
        %1915 = vst [vmem:[%s135 + $0x788] sm:$0xff] %v1403
        %1916 = vst [vmem:[%s135 + $0x790] sm:$0xff] %v1404
        %1917 = vst [vmem:[%s135 + $0x798] sm:$0xff] %v1405
        %1918 = vst [vmem:[%s135 + $0x7a0] sm:$0xff] %v1406
        %1919 = vst [vmem:[%s135 + $0x7a8] sm:$0xff] %v1407
        %1920 = vst [vmem:[%s135 + $0x7b0] sm:$0xff] %v1408
        %1921 = vst [vmem:[%s135 + $0x7b8] sm:$0xff] %v1409
        %1922 = vst [vmem:[%s135 + $0x7c0] sm:$0xff] %v1410
        %1923 = vst [vmem:[%s135 + $0x7c8] sm:$0xff] %v1411
        %1924 = vst [vmem:[%s135 + $0x7d0] sm:$0xff] %v1412
        %1925 = vst [vmem:[%s135 + $0x7d8] sm:$0xff] %v1413
        %1926 = vst [vmem:[%s135 + $0x7e0] sm:$0xff] %v1414
        %1927 = vst [vmem:[%s135 + $0x7e8] sm:$0xff] %v1415
        %1928 = vst [vmem:[%s135 + $0x7f0] sm:$0xff] %v1416
        %1929 = vst [vmem:[%s135 + $0x7f8] sm:$0xff] %v1417
        %1930 = vst [vmem:[%s135 + $0x800] sm:$0xff] %v1418
        %1931 = vst [vmem:[%s135 + $0x808] sm:$0xff] %v1419
        %1932 = vst [vmem:[%s135 + $0x810] sm:$0xff] %v1420
        %1933 = vst [vmem:[%s135 + $0x818] sm:$0xff] %v1421
        %1934 = vst [vmem:[%s135 + $0x820] sm:$0xff] %v1422
        %1935 = vst [vmem:[%s135 + $0x828] sm:$0xff] %v1423
        %1936 = vst [vmem:[%s135 + $0x830] sm:$0xff] %v1424
        %1937 = vst [vmem:[%s135 + $0x838] sm:$0xff] %v1425
        %1938 = vst [vmem:[%s135 + $0x840] sm:$0xff] %v1426
        %1939 = vst [vmem:[%s135 + $0x848] sm:$0xff] %v1427
        %1940 = vst [vmem:[%s135 + $0x850] sm:$0xff] %v1428
        %1941 = vst [vmem:[%s135 + $0x858] sm:$0xff] %v1429
        %1942 = vst [vmem:[%s135 + $0x860] sm:$0xff] %v1430
        %1943 = vst [vmem:[%s135 + $0x868] sm:$0xff] %v1431
        %1944 = vst [vmem:[%s135 + $0x870] sm:$0xff] %v1432
        %1945 = vst [vmem:[%s135 + $0x878] sm:$0xff] %v1433
        %1946 = vst [vmem:[%s135 + $0x880] sm:$0xff] %v1434
        %1947 = vst [vmem:[%s135 + $0x888] sm:$0xff] %v1435
        %1948 = vst [vmem:[%s135 + $0x890] sm:$0xff] %v1436
        %1949 = vst [vmem:[%s135 + $0x898] sm:$0xff] %v1437
        %1950 = vst [vmem:[%s135 + $0x8a0] sm:$0xff] %v1438
        %1951 = vst [vmem:[%s135 + $0x8a8] sm:$0xff] %v1439
        %1952 = vst [vmem:[%s135 + $0x8b0] sm:$0xff] %v1440
        %1953 = vst [vmem:[%s135 + $0x8b8] sm:$0xff] %v1441
        %1954 = vst [vmem:[%s135 + $0x8c0] sm:$0xff] %v1442
        %1955 = vst [vmem:[%s135 + $0x8c8] sm:$0xff] %v1443
        %1956 = vst [vmem:[%s135 + $0x8d0] sm:$0xff] %v1444
        %1957 = vst [vmem:[%s135 + $0x8d8] sm:$0xff] %v1445
        %1958 = vst [vmem:[%s135 + $0x8e0] sm:$0xff] %v1446
        %1959 = vst [vmem:[%s135 + $0x8e8] sm:$0xff] %v1447
        %1960 = vst [vmem:[%s135 + $0x8f0] sm:$0xff] %v1448
        %1961 = vst [vmem:[%s135 + $0x8f8] sm:$0xff] %v1449
        %1962 = vst [vmem:[%s135 + $0x900] sm:$0xff] %v1450
        %1963 = vst [vmem:[%s135 + $0x908] sm:$0xff] %v1451
        %1964 = vst [vmem:[%s135 + $0x910] sm:$0xff] %v1452
        %1965 = vst [vmem:[%s135 + $0x918] sm:$0xff] %v1453
        %1966 = vst [vmem:[%s135 + $0x920] sm:$0xff] %v1454
        %1967 = vst [vmem:[%s135 + $0x928] sm:$0xff] %v1455
        %1968 = vst [vmem:[%s135 + $0x930] sm:$0xff] %v1456
        %1969 = vst [vmem:[%s135 + $0x938] sm:$0xff] %v1457
        %1970 = vst [vmem:[%s135 + $0x940] sm:$0xff] %v1458
        %1971 = vst [vmem:[%s135 + $0x948] sm:$0xff] %v1459
        %1972 = vst [vmem:[%s135 + $0x950] sm:$0xff] %v1460
        %1973 = vst [vmem:[%s135 + $0x958] sm:$0xff] %v1461
        %1974 = vst [vmem:[%s135 + $0x960] sm:$0xff] %v1462
        %1975 = vst [vmem:[%s135 + $0x968] sm:$0xff] %v1463
        %1976 = vst [vmem:[%s135 + $0x970] sm:$0xff] %v1464
        %1977 = vst [vmem:[%s135 + $0x978] sm:$0xff] %v1465
        %1978 = vst [vmem:[%s135 + $0x980] sm:$0xff] %v1466
        %1979 = vst [vmem:[%s135 + $0x988] sm:$0xff] %v1467
        %1980 = vst [vmem:[%s135 + $0x990] sm:$0xff] %v1468
        %1981 = vst [vmem:[%s135 + $0x998] sm:$0xff] %v1469
        %1982 = vst [vmem:[%s135 + $0x9a0] sm:$0xff] %v1470
        %1983 = vst [vmem:[%s135 + $0x9a8] sm:$0xff] %v1471
        %1984 = vst [vmem:[%s135 + $0x9b0] sm:$0xff] %v1472
        %1985 = vst [vmem:[%s135 + $0x9b8] sm:$0xff] %v1473
        %1986 = vst [vmem:[%s135 + $0x9c0] sm:$0xff] %v1474
        %1987 = vst [vmem:[%s135 + $0x9c8] sm:$0xff] %v1475
        %1988 = vst [vmem:[%s135 + $0x9d0] sm:$0xff] %v1476
        %1989 = vst [vmem:[%s135 + $0x9d8] sm:$0xff] %v1477
        %1990 = vst [vmem:[%s135 + $0x9e0] sm:$0xff] %v1478
        %1991 = vst [vmem:[%s135 + $0x9e8] sm:$0xff] %v1479
        %1992 = vst [vmem:[%s135 + $0x9f0] sm:$0xff] %v1480
        %1993 = vst [vmem:[%s135 + $0x9f8] sm:$0xff] %v1481
        %1994 = vst [vmem:[%s135 + $0xa00] sm:$0xff] %v1482
        %1995 = vst [vmem:[%s135 + $0xa08] sm:$0xff] %v1483
        %1996 = vst [vmem:[%s135 + $0xa10] sm:$0xff] %v1484
        %1997 = vst [vmem:[%s135 + $0xa18] sm:$0xff] %v1485
        %1998 = vst [vmem:[%s135 + $0xa20] sm:$0xff] %v1486
        %1999 = vst [vmem:[%s135 + $0xa28] sm:$0xff] %v1487
        %2000 = vst [vmem:[%s135 + $0xa30] sm:$0xff] %v1488
        %2001 = vst [vmem:[%s135 + $0xa38] sm:$0xff] %v1489
        %2002 = vst [vmem:[%s135 + $0xa40] sm:$0xff] %v1490
        %2003 = vst [vmem:[%s135 + $0xa48] sm:$0xff] %v1491
        %2004 = vst [vmem:[%s135 + $0xa50] sm:$0xff] %v1492
        %2005 = vst [vmem:[%s135 + $0xa58] sm:$0xff] %v1493
        %2006 = vst [vmem:[%s135 + $0xa60] sm:$0xff] %v1494
        %2007 = vst [vmem:[%s135 + $0xa68] sm:$0xff] %v1495
        %2008 = vst [vmem:[%s135 + $0xa70] sm:$0xff] %v1496
        %2009 = vst [vmem:[%s135 + $0xa78] sm:$0xff] %v1497
        %2010 = vst [vmem:[%s135 + $0xa80] sm:$0xff] %v1498
        %2011 = vst [vmem:[%s135 + $0xa88] sm:$0xff] %v1499
        %2012 = vst [vmem:[%s135 + $0xa90] sm:$0xff] %v1500
        %2013 = vst [vmem:[%s135 + $0xa98] sm:$0xff] %v1501
        %2014 = vst [vmem:[%s135 + $0xaa0] sm:$0xff] %v1502
        %2015 = vst [vmem:[%s135 + $0xaa8] sm:$0xff] %v1503
        %2016 = vst [vmem:[%s135 + $0xab0] sm:$0xff] %v1504
        %2017 = vst [vmem:[%s135 + $0xab8] sm:$0xff] %v1505
        %2018 = vst [vmem:[%s135 + $0xac0] sm:$0xff] %v1506
        %2019 = vst [vmem:[%s135 + $0xac8] sm:$0xff] %v1507
        %2020 = vst [vmem:[%s135 + $0xad0] sm:$0xff] %v1508
        %2021 = vst [vmem:[%s135 + $0xad8] sm:$0xff] %v1509
        %2022 = vst [vmem:[%s135 + $0xae0] sm:$0xff] %v1510
        %2023 = vst [vmem:[%s135 + $0xae8] sm:$0xff] %v1511
        %2024 = vst [vmem:[%s135 + $0xaf0] sm:$0xff] %v1512
        %2025 = vst [vmem:[%s135 + $0xaf8] sm:$0xff] %v1513
        %2026 = vst [vmem:[%s135 + $0xb00] sm:$0xff] %v1514
        %2027 = vst [vmem:[%s135 + $0xb08] sm:$0xff] %v1515
        %2028 = vst [vmem:[%s135 + $0xb10] sm:$0xff] %v1516
        %2029 = vst [vmem:[%s135 + $0xb18] sm:$0xff] %v1517
        %2030 = vst [vmem:[%s135 + $0xb20] sm:$0xff] %v1518
        %2031 = vst [vmem:[%s135 + $0xb28] sm:$0xff] %v1519
        %2032 = vst [vmem:[%s135 + $0xb30] sm:$0xff] %v1520
        %2033 = vst [vmem:[%s135 + $0xb38] sm:$0xff] %v1521
        %2034 = vst [vmem:[%s135 + $0xb40] sm:$0xff] %v1522
        %2035 = vst [vmem:[%s135 + $0xb48] sm:$0xff] %v1523
        %2036 = vst [vmem:[%s135 + $0xb50] sm:$0xff] %v1524
        %2037 = vst [vmem:[%s135 + $0xb58] sm:$0xff] %v1525
        %2038 = vst [vmem:[%s135 + $0xb60] sm:$0xff] %v1526
        %2039 = vst [vmem:[%s135 + $0xb68] sm:$0xff] %v1527
        %2040 = vst [vmem:[%s135 + $0xb70] sm:$0xff] %v1528
        %2041 = vst [vmem:[%s135 + $0xb78] sm:$0xff] %v1529
        %2042 = vst [vmem:[%s135 + $0xb80] sm:$0xff] %v1530
        %2043 = vst [vmem:[%s135 + $0xb88] sm:$0xff] %v1531
        %2044 = vst [vmem:[%s135 + $0xb90] sm:$0xff] %v1532
        %2045 = vst [vmem:[%s135 + $0xb98] sm:$0xff] %v1533
        %2046 = vst [vmem:[%s135 + $0xba0] sm:$0xff] %v1534
        %2047 = vst [vmem:[%s135 + $0xba8] sm:$0xff] %v1535
        %2048 = vst [vmem:[%s135 + $0xbb0] sm:$0xff] %v1536
        %2049 = vst [vmem:[%s135 + $0xbb8] sm:$0xff] %v1537
        %2050 = vst [vmem:[%s135 + $0xbc0] sm:$0xff] %v1538
        %2051 = vst [vmem:[%s135 + $0xbc8] sm:$0xff] %v1539
        %2052 = vst [vmem:[%s135 + $0xbd0] sm:$0xff] %v1540
        %2053 = vst [vmem:[%s135 + $0xbd8] sm:$0xff] %v1541
        %2054 = vst [vmem:[%s135 + $0xbe0] sm:$0xff] %v1542
        %2055 = vst [vmem:[%s135 + $0xbe8] sm:$0xff] %v1543
        %2056 = vst [vmem:[%s135 + $0xbf0] sm:$0xff] %v1544
        %2057 = vst [vmem:[%s135 + $0xbf8] sm:$0xff] %v1545
        %2058 = vst [vmem:[%s135 + $0xc00] sm:$0xff] %v1546
        %2059 = vst [vmem:[%s135 + $0xc08] sm:$0xff] %v1547
        %2060 = vst [vmem:[%s135 + $0xc10] sm:$0xff] %v1548
        %2061 = vst [vmem:[%s135 + $0xc18] sm:$0xff] %v1549
        %2062 = vst [vmem:[%s135 + $0xc20] sm:$0xff] %v1550
        %2063 = vst [vmem:[%s135 + $0xc28] sm:$0xff] %v1551
        %2064 = vst [vmem:[%s135 + $0xc30] sm:$0xff] %v1552
        %2065 = vst [vmem:[%s135 + $0xc38] sm:$0xff] %v1553
        %2066 = vst [vmem:[%s135 + $0xc40] sm:$0xff] %v1554
        %2067 = vst [vmem:[%s135 + $0xc48] sm:$0xff] %v1555
        %2068 = vst [vmem:[%s135 + $0xc50] sm:$0xff] %v1556
        %2069 = vst [vmem:[%s135 + $0xc58] sm:$0xff] %v1557
        %2070 = vst [vmem:[%s135 + $0xc60] sm:$0xff] %v1558
        %2071 = vst [vmem:[%s135 + $0xc68] sm:$0xff] %v1559
        %2072 = vst [vmem:[%s135 + $0xc70] sm:$0xff] %v1560
        %2073 = vst [vmem:[%s135 + $0xc78] sm:$0xff] %v1561
        %2074 = vst [vmem:[%s135 + $0xc80] sm:$0xff] %v1562
        %2075 = vst [vmem:[%s135 + $0xc88] sm:$0xff] %v1563
        %2076 = vst [vmem:[%s135 + $0xc90] sm:$0xff] %v1564
        %2077 = vst [vmem:[%s135 + $0xc98] sm:$0xff] %v1565
        %2078 = vst [vmem:[%s135 + $0xca0] sm:$0xff] %v1566
        %2079 = vst [vmem:[%s135 + $0xca8] sm:$0xff] %v1567
        %2080 = vst [vmem:[%s135 + $0xcb0] sm:$0xff] %v1568
        %2081 = vst [vmem:[%s135 + $0xcb8] sm:$0xff] %v1569
        %2082 = vst [vmem:[%s135 + $0xcc0] sm:$0xff] %v1570
        %2083 = vst [vmem:[%s135 + $0xcc8] sm:$0xff] %v1571
        %2084 = vst [vmem:[%s135 + $0xcd0] sm:$0xff] %v1572
        %2085 = vst [vmem:[%s135 + $0xcd8] sm:$0xff] %v1573
        %2086 = vst [vmem:[%s135 + $0xce0] sm:$0xff] %v1574
        %2087 = vst [vmem:[%s135 + $0xce8] sm:$0xff] %v1575
        %2088 = vst [vmem:[%s135 + $0xcf0] sm:$0xff] %v1576
        %2089 = vst [vmem:[%s135 + $0xcf8] sm:$0xff] %v1577
        %2090 = vst [vmem:[%s135 + $0xd00] sm:$0xff] %v1578
        %2091 = vst [vmem:[%s135 + $0xd08] sm:$0xff] %v1579
        %2092 = vst [vmem:[%s135 + $0xd10] sm:$0xff] %v1580
        %2093 = vst [vmem:[%s135 + $0xd18] sm:$0xff] %v1581
        %2094 = vst [vmem:[%s135 + $0xd20] sm:$0xff] %v1582
        %2095 = vst [vmem:[%s135 + $0xd28] sm:$0xff] %v1583
        %2096 = vst [vmem:[%s135 + $0xd30] sm:$0xff] %v1584
        %2097 = vst [vmem:[%s135 + $0xd38] sm:$0xff] %v1585
        %2098 = vst [vmem:[%s135 + $0xd40] sm:$0xff] %v1586
        %2099 = vst [vmem:[%s135 + $0xd48] sm:$0xff] %v1587
        %2100 = vst [vmem:[%s135 + $0xd50] sm:$0xff] %v1588
        %2101 = vst [vmem:[%s135 + $0xd58] sm:$0xff] %v1589
        %2102 = vst [vmem:[%s135 + $0xd60] sm:$0xff] %v1590
        %2103 = vst [vmem:[%s135 + $0xd68] sm:$0xff] %v1591
        %2104 = vst [vmem:[%s135 + $0xd70] sm:$0xff] %v1592
        %2105 = vst [vmem:[%s135 + $0xd78] sm:$0xff] %v1593
        %2106 = vst [vmem:[%s135 + $0xd80] sm:$0xff] %v1594
        %2107 = vst [vmem:[%s135 + $0xd88] sm:$0xff] %v1595
        %2108 = vst [vmem:[%s135 + $0xd90] sm:$0xff] %v1596
        %2109 = vst [vmem:[%s135 + $0xd98] sm:$0xff] %v1597
        %2110 = vst [vmem:[%s135 + $0xda0] sm:$0xff] %v1598
        %2111 = vst [vmem:[%s135 + $0xda8] sm:$0xff] %v1599
        %2112 = vst [vmem:[%s135 + $0xdb0] sm:$0xff] %v1600
        %2113 = vst [vmem:[%s135 + $0xdb8] sm:$0xff] %v1601
        %2114 = vst [vmem:[%s135 + $0xdc0] sm:$0xff] %v1602
        %2115 = vst [vmem:[%s135 + $0xdc8] sm:$0xff] %v1603
        %2116 = vst [vmem:[%s135 + $0xdd0] sm:$0xff] %v1604
        %2117 = vst [vmem:[%s135 + $0xdd8] sm:$0xff] %v1605
        %2118 = vst [vmem:[%s135 + $0xde0] sm:$0xff] %v1606
        %2119 = vst [vmem:[%s135 + $0xde8] sm:$0xff] %v1607
        %2120 = vst [vmem:[%s135 + $0xdf0] sm:$0xff] %v1608
        %2121 = vst [vmem:[%s135 + $0xdf8] sm:$0xff] %v1609
        %2122 = vst [vmem:[%s135 + $0xe00] sm:$0xff] %v1610
        %2123 = vst [vmem:[%s135 + $0xe08] sm:$0xff] %v1611
        %2124 = vst [vmem:[%s135 + $0xe10] sm:$0xff] %v1612
        %2125 = vst [vmem:[%s135 + $0xe18] sm:$0xff] %v1613
        %2126 = vst [vmem:[%s135 + $0xe20] sm:$0xff] %v1614
        %2127 = vst [vmem:[%s135 + $0xe28] sm:$0xff] %v1615
        %2128 = vst [vmem:[%s135 + $0xe30] sm:$0xff] %v1616
        %2129 = vst [vmem:[%s135 + $0xe38] sm:$0xff] %v1617
        %2130 = vst [vmem:[%s135 + $0xe40] sm:$0xff] %v1618
        %2131 = vst [vmem:[%s135 + $0xe48] sm:$0xff] %v1619
        %2132 = vst [vmem:[%s135 + $0xe50] sm:$0xff] %v1620
        %2133 = vst [vmem:[%s135 + $0xe58] sm:$0xff] %v1621
        %2134 = vst [vmem:[%s135 + $0xe60] sm:$0xff] %v1622
        %2135 = vst [vmem:[%s135 + $0xe68] sm:$0xff] %v1623
        %2136 = vst [vmem:[%s135 + $0xe70] sm:$0xff] %v1624
        %2137 = vst [vmem:[%s135 + $0xe78] sm:$0xff] %v1625
        %2138 = vst [vmem:[%s135 + $0xe80] sm:$0xff] %v1626
        %2139 = vst [vmem:[%s135 + $0xe88] sm:$0xff] %v1627
        %2140 = vst [vmem:[%s135 + $0xe90] sm:$0xff] %v1628
        %2141 = vst [vmem:[%s135 + $0xe98] sm:$0xff] %v1629
        %2142 = vst [vmem:[%s135 + $0xea0] sm:$0xff] %v1630
        %2143 = vst [vmem:[%s135 + $0xea8] sm:$0xff] %v1631
        %2144 = vst [vmem:[%s135 + $0xeb0] sm:$0xff] %v1632
        %2145 = vst [vmem:[%s135 + $0xeb8] sm:$0xff] %v1633
        %2146 = vst [vmem:[%s135 + $0xec0] sm:$0xff] %v1634
        %2147 = vst [vmem:[%s135 + $0xec8] sm:$0xff] %v1635
        %2148 = vst [vmem:[%s135 + $0xed0] sm:$0xff] %v1636
        %2149 = vst [vmem:[%s135 + $0xed8] sm:$0xff] %v1637
        %2150 = vst [vmem:[%s135 + $0xee0] sm:$0xff] %v1638
        %2151 = vst [vmem:[%s135 + $0xee8] sm:$0xff] %v1639
        %2152 = vst [vmem:[%s135 + $0xef0] sm:$0xff] %v1640
        %2153 = vst [vmem:[%s135 + $0xef8] sm:$0xff] %v1641
        %2154 = vst [vmem:[%s135 + $0xf00] sm:$0xff] %v1642
        %2155 = vst [vmem:[%s135 + $0xf08] sm:$0xff] %v1643
        %2156 = vst [vmem:[%s135 + $0xf10] sm:$0xff] %v1644
        %2157 = vst [vmem:[%s135 + $0xf18] sm:$0xff] %v1645
        %2158 = vst [vmem:[%s135 + $0xf20] sm:$0xff] %v1646
        %2159 = vst [vmem:[%s135 + $0xf28] sm:$0xff] %v1647
        %2160 = vst [vmem:[%s135 + $0xf30] sm:$0xff] %v1648
        %2161 = vst [vmem:[%s135 + $0xf38] sm:$0xff] %v1649
        %2162 = vst [vmem:[%s135 + $0xf40] sm:$0xff] %v1650
        %2163 = vst [vmem:[%s135 + $0xf48] sm:$0xff] %v1651
        %2164 = vst [vmem:[%s135 + $0xf50] sm:$0xff] %v1652
        %2165 = vst [vmem:[%s135 + $0xf58] sm:$0xff] %v1653
        %2166 = vst [vmem:[%s135 + $0xf60] sm:$0xff] %v1654
        %2167 = vst [vmem:[%s135 + $0xf68] sm:$0xff] %v1655
        %2168 = vst [vmem:[%s135 + $0xf70] sm:$0xff] %v1656
        %2169 = vst [vmem:[%s135 + $0xf78] sm:$0xff] %v1657
        %2170 = vst [vmem:[%s135 + $0xf80] sm:$0xff] %v1658
        %2171 = vst [vmem:[%s135 + $0xf88] sm:$0xff] %v1659
        %2172 = vst [vmem:[%s135 + $0xf90] sm:$0xff] %v1660
        %2173 = vst [vmem:[%s135 + $0xf98] sm:$0xff] %v1661
        %2174 = vst [vmem:[%s135 + $0xfa0] sm:$0xff] %v1662
        %2175 = vst [vmem:[%s135 + $0xfa8] sm:$0xff] %v1663
        %2176 = vst [vmem:[%s135 + $0xfb0] sm:$0xff] %v1664
        %2177 = vst [vmem:[%s135 + $0xfb8] sm:$0xff] %v1665
        %2178 = vst [vmem:[%s135 + $0xfc0] sm:$0xff] %v1666
        %2179 = vst [vmem:[%s135 + $0xfc8] sm:$0xff] %v1667
        %2180 = vst [vmem:[%s135 + $0xfd0] sm:$0xff] %v1668
        %2181 = vst [vmem:[%s135 + $0xfd8] sm:$0xff] %v1669
        %2182 = vst [vmem:[%s135 + $0xfe0] sm:$0xff] %v1670
        %2183 = vst [vmem:[%s135 + $0xfe8] sm:$0xff] %v1671
        %2184 = vst [vmem:[%s135 + $0xff0] sm:$0xff] %v1672
        %2185 = vst [vmem:[%s135 + $0xff8] sm:$0xff] %v1673
        %s2186 = sand.u32 %s52, 1
        %s2187 = scalar_lea.sflag [#allocation4], %s2186
        %s2188 = sand.u32 %s52, 1
        %s2189 = smul.addr %s2188, 4096
        %s2190 = scalar_lea.vmem [#allocation5], %s2189
        // Predicated region
        $region29: #{tpu_custom_call.1} parent=23 // pred_check
          %p2191 = pneg %p62
        $region30: #{tpu_custom_call.1} parent=23 // pred_check_branch
          %2193 = sbr.rel (%p2191) target = $region32
        $region31: #{tpu_custom_call.1} parent=23 // pred_region
          %s2194 = smul.u32 2, %s18
          %s2196 = ssub.s32 65536, 65536
          %2197 = vsyncadd %s2187, %s2196
          %s2198 = smul.addr %s2194, 256
          %s2199 = smul.addr %s2198, 128
          %s2200 = scalar_lea.hbm %s1, %s2199
          %s2201 = sshll.u32 %s2190, 4
          %s2202 = int_to_ptr.vmem [resolvable:$true] %s2201
          %2207 = dma.vmem_to_hbm [thread:$0]  %s2202, 65536, %s2200, %s2187, 32768, 32768, 2048
        $region32: #{tpu_custom_call.1} parent=23 // pred_fallthru
          _
      $region24: #{tpu_custom_call.1} parent=5 // pred_fallthru
        _
      %p2208 = scmp.le.s32.totalorder 2, %s13
      // Predicated region
      $region33: #{tpu_custom_call.1} parent=5 // pred_check
        %p2209 = pneg %p2208
      $region34: #{tpu_custom_call.1} parent=5 // pred_check_branch
        %2211 = sbr.rel (%p2209) target = $region36
      $region35: #{tpu_custom_call.1} parent=5 // pred_region
        %s2212 = ssub.s32 %s13, 2
        // Predicated region
        $region37: #{tpu_custom_call.1} parent=35 // pred_check
          %p2213 = pneg %p68
        $region38: #{tpu_custom_call.1} parent=35 // pred_check_branch
          %2215 = sbr.rel (%p2213) target = $region40
        $region39: #{tpu_custom_call.1} parent=35 // pred_region
          %s2216 = sand.u32 %s53, 1
          %s2217 = scalar_lea.sflag [#allocation4], %s2216
          %s2218 = sand.u32 %s53, 1
          %s2219 = smul.addr %s2218, 4096
          %s2220 = scalar_lea.vmem [#allocation5], %s2219
          %2221 = dma.done %s2217, 65536
        $region40: #{tpu_custom_call.1} parent=35 // pred_fallthru
          _
      $region36: #{tpu_custom_call.1} parent=5 // pred_fallthru
        _
    $region6: #{tpu_custom_call.1} parent=1 // loop_footer
      %s17 = sadd.s32 1, %s13
    $region7: #{tpu_custom_call.1} parent=1 // loop_footer_branch
      %12 = sbr.rel target = $region3
    $region8: #{tpu_custom_call.1} parent=1 // loop_exit
      _
    %2222 = vsyncpa [#allocation3], 1
    %s2223 = scalar_lea.sflag [#allocation3], 1
    %2224 = vsyncpa %s2223, 1
    %2225 = vsyncpa [#allocation4], 1
    %s2226 = scalar_lea.sflag [#allocation4], 1
    %2227 = vsyncpa %s2226, 1

</llo_original>
